<compile_context>
chip_gen: v5e
topology: v5e:2x2
jax: 0.10.0
libtpu: 0.0.40
codegen_flags: <defaults>
</compile_context>

<pallas_src>
import functools

import jax
import jax.numpy as jnp
from jax import lax
from jax.experimental import pallas as pl
from jax.experimental.pallas import tpu as pltpu


def _round_up(x, m):
    return ((x + m - 1) // m) * m


def _supcon_kernel(feat_q_ref, feat_k_ref, lbl_q_ref, lbl_k_ref, valid_k_ref,
                   pos_cnt_ref, loss_ref, qs_sc, m_sc, l_sc, s_sc, *,
                   inv_temp, tq, tk, mask_last):
    # feat_q_ref : [TQ, Dp] anchor-row feature tile
    # feat_k_ref : [TK, Dp] contrast-column feature tile
    # lbl_q_ref  : [TQ, 1]  anchor labels (column orientation)
    # lbl_k_ref  : [1, TK]  contrast labels (row orientation)
    # valid_k_ref: [1, TK]  1 for real columns, 0 for padding
    # pos_cnt_ref: [TQ, 1]  #positive pairs per anchor (precomputed on host)
    # loss_ref   : [TQ, 1]  per-anchor loss (written on last column tile)
    # qs_sc      : [TQ, Dp] anchor tile pre-scaled by 1/T (per row tile)
    # m/l/s_sc   : [TQ, 1]  running max / denominator / positive-logit sum
    qi = pl.program_id(0)
    kj = pl.program_id(1)
    nk = pl.num_programs(1)

    @pl.when(kj == 0)
    def _init():
        # Fold 1/T into the anchor tile ONCE per row tile: a [TQ,Dp] multiply
        # amortized over all kj instead of a [TQ,TK] multiply per tile.
        # Scratch keeps the compute dtype so the MXU inputs stay narrow.
        qs_sc[...] = feat_q_ref[...] * inv_temp
        m_sc[...] = jnp.full_like(m_sc, -jnp.inf)
        l_sc[...] = jnp.zeros_like(l_sc)
        s_sc[...] = jnp.zeros_like(s_sc)

    # Similarity tile on the MXU, contracting the feature axis of BOTH
    # operands (no in-kernel transpose / XLU relayout), f32 accumulation.
    scores = lax.dot_general(
        qs_sc[...], feat_k_ref[...],
        dimension_numbers=(((1,), (1,)), ((), ())),
        preferred_element_type=jnp.float32)                       # [TQ, TK]

    # Online max / denominator update.
    # INVARIANT: the max is taken over the UNmasked tile.  Padded feature rows
    # are all-zero, so padded columns contribute score 0, which never exceeds
    # the self-score (||f||^2 / T >= 0) -> the raw tile max equals the real
    # row max.  Do NOT mask before this jnp.max.
    m_prev = m_sc[...]
    m_new = jnp.maximum(m_prev, jnp.max(scores, axis=1, keepdims=True))
    alpha = jnp.exp(m_prev - m_new)                               # 0 on first tile
    m_sc[...] = m_new
    l_prev = alpha * l_sc[...]

    same_lbl = lbl_q_ref[...] == lbl_k_ref[...]                   # [TQ, TK]

    # Masks are only needed on (a) the single column tile intersecting this
    # row tile's self-diagonal and (b) the last column tile when N was padded.
    # Everywhere else take a mask-free fast path (saves several full-width
    # VALU passes per tile; with small D the kernel is VPU/EUP-bound).
    row_start = qi * tq
    col_start = kj * tk
    on_diag = jnp.logical_and(col_start < row_start + tq,
                              row_start < col_start + tk)
    if mask_last:
        needs_mask = jnp.logical_or(on_diag, kj == nk - 1)
    else:
        needs_mask = on_diag

    @pl.when(needs_mask)
    def _masked():
        row_g = row_start + lax.broadcasted_iota(jnp.int32, (tq, tk), 0)
        col_g = col_start + lax.broadcasted_iota(jnp.int32, (tq, tk), 1)
        keep = row_g != col_g                                     # drop self pair
        if mask_last:
            keep = jnp.logical_and(keep, valid_k_ref[...] != 0)   # drop padded cols
        e = jnp.where(keep, jnp.exp(scores - m_new), 0.0)
        l_sc[...] = l_prev + jnp.sum(e, axis=1, keepdims=True)
        pos = jnp.logical_and(same_lbl, keep)
        s_sc[...] += jnp.sum(jnp.where(pos, scores, 0.0), axis=1, keepdims=True)

    @pl.when(jnp.logical_not(needs_mask))
    def _fast():
        e = jnp.exp(scores - m_new)
        l_sc[...] = l_prev + jnp.sum(e, axis=1, keepdims=True)
        s_sc[...] += jnp.sum(jnp.where(same_lbl, scores, 0.0),
                             axis=1, keepdims=True)

    @pl.when(kj == nk - 1)
    def _finalize():
        # loss_i = m_i + log(l_i) - s_i / c_i  (log_prob never materialized).
        # Anchors with zero positives are clamped (PyTorch reference would give
        # NaN; documented deviation).  Padded rows are sliced off in the wrapper.
        cnt = jnp.maximum(pos_cnt_ref[...], 1.0)
        loss_ref[...] = m_sc[...] + jnp.log(l_sc[...]) - s_sc[...] / cnt


def _select_tiles(n, vmem_cap_bytes):
    """Generation-aware tile selection.

    * TK minimizes padding over lane-aligned candidates (padding cost is
      quadratic in n_pad); ties broken toward the larger tile.
    * TQ as large as the generation's VMEM comfortably allows (bigger TQ cuts
      the N/TQ re-streams of the contrast matrix), must divide n_pad, and on
      small-VMEM / 2-TensorCore parts (v7x) keep >= 2 row tiles so the
      "parallel" row axis actually feeds both cores.
    """
    small_vmem = vmem_cap_bytes <= 64 * 1024 * 1024            # v7x-like
    tk = min((512, 256, 128), key=lambda t: (_round_up(n, t), -t))
    n_pad = _round_up(n, tk)
    tq_max = 256 if small_vmem else 512
    min_row_tiles = 2 if small_vmem else 1
    cand = [t for t in range(8, min(tq_max, n_pad) + 1, 8)
            if n_pad % t == 0 and n_pad // t >= min_row_tiles]
    tq = max(cand) if cand else 8
    return tq, tk, n_pad


def _derive_vmem_limit(tq, tk, d_pad, comp_bytes, vmem_cap_bytes):
    """Derive the scoped-VMEM limit from the actual buffer footprint."""
    col = lambda rows: rows * 128 * 4          # (rows,1) word arrays pad to 128 lanes
    need = 0
    need += 2 * tq * d_pad * comp_bytes        # feat_q, double buffered
    need += 2 * tk * d_pad * comp_bytes        # feat_k, double buffered
    need += 2 * 2 * col(tq)                    # lbl_col + pos_cnt, double buffered
    need += 2 * 2 * 8 * tk * 4                 # lbl_row + valid_row (pad to 8 sublanes)
    need += 2 * col(tq)                        # output block
    need += tq * d_pad * comp_bytes + 3 * col(tq)   # qs / m / l / s scratch
    need += 6 * tq * tk * 4                    # scores / exp / mask temporaries
    need += 4 * 1024 * 1024                    # headroom for compiler internals
    return int(min(max(need, 32 * 1024 * 1024), int(0.75 * vmem_cap_bytes)))


def supcon_loss(features, labels, temperature=0.07, compute_dtype=jnp.bfloat16):
    """features: [bsz, n_views, dim]; labels: [bsz] int. Returns scalar loss.

    compute_dtype=jnp.bfloat16 (default) halves feature VMEM/HBM traffic (the
    contrast tiles are re-streamed once per row tile, so this halves the
    dominant HBM term) and gives native-rate MXU issue; accumulation stays
    f32.  Pass jnp.float32 for bit-tight parity with the PyTorch reference.
    """
    bsz, n_views, dim = features.shape
    if labels.shape[0] != bsz:
        raise ValueError("Num of labels does not match num of features")
    n = bsz * n_views

    # The loss is a mean over anchors and is invariant to anchor order, so use
    # the natural sample-major flattening (no transpose HBM round trip).
    feat = features.reshape(n, dim).astype(compute_dtype)
    labels = labels.astype(jnp.int32)
    labels_full = jnp.repeat(labels, n_views)                        # [N]
    counts = jnp.sum(labels[:, None] == labels[None, :], axis=1)     # [bsz]
    pos_cnt = (jnp.repeat(counts, n_views) * n_views - 1).astype(jnp.float32)

    try:
        vmem_cap = int(pltpu.get_tpu_info().vmem_capacity_bytes)
    except Exception:
        vmem_cap = 64 * 1024 * 1024          # conservative fallback (v7x-like)

    tq, tk, n_pad = _select_tiles(n, vmem_cap)
    d_pad = _round_up(dim, 128)              # lane-dense feature loads / MXU contraction
    mask_last = n_pad > n                    # padding only ever lives in the last k tile

    feat_p = jnp.zeros((n_pad, d_pad), compute_dtype).at[:n, :dim].set(feat)
    lbl_col = jnp.full((n_pad, 1), -1, jnp.int32).at[:n, 0].set(labels_full)
    lbl_row = lbl_col.reshape(1, n_pad)
    valid_row = (jnp.arange(n_pad, dtype=jnp.int32) < n).astype(jnp.int32).reshape(1, n_pad)
    pos_cnt_col = jnp.ones((n_pad, 1), jnp.float32).at[:n, 0].set(pos_cnt)

    grid = (n_pad // tq, n_pad // tk)
    kernel = functools.partial(_supcon_kernel, inv_temp=float(1.0 / temperature),
                               tq=tq, tk=tk, mask_last=mask_last)

    comp_bytes = jnp.dtype(compute_dtype).itemsize
    bytes_feat = n_pad * d_pad * comp_bytes
    # q tiles stream once in total (block index constant over kj); k tiles are
    # re-streamed once per row tile.
    cost = pl.CostEstimate(
        flops=2 * n_pad * n_pad * d_pad,
        transcendentals=n_pad * n_pad + 2 * n_pad,
        bytes_accessed=bytes_feat * (1 + grid[0]) + 16 * n_pad,
    )

    per_anchor = pl.pallas_call(
        kernel,
        out_shape=jax.ShapeDtypeStruct((n_pad, 1), jnp.float32),
        grid_spec=pltpu.PrefetchScalarGridSpec(
            num_scalar_prefetch=0,
            grid=grid,
            in_specs=[
                pl.BlockSpec((tq, d_pad), lambda qi, kj: (qi, 0)),   # anchor rows
                # If an xprof trace on v5e shows exposed DMA on the kj loop,
                # add pipeline_mode=pl.Buffered(3) to this contrast-row spec.
                pl.BlockSpec((tk, d_pad), lambda qi, kj: (kj, 0)),   # contrast rows
                pl.BlockSpec((tq, 1), lambda qi, kj: (qi, 0)),       # labels (col)
                pl.BlockSpec((1, tk), lambda qi, kj: (0, kj)),       # labels (row)
                pl.BlockSpec((1, tk), lambda qi, kj: (0, kj)),       # col validity
                pl.BlockSpec((tq, 1), lambda qi, kj: (qi, 0)),       # positives count
            ],
            out_specs=pl.BlockSpec((tq, 1), lambda qi, kj: (qi, 0)),
            scratch_shapes=[
                pltpu.VMEM((tq, d_pad), compute_dtype),   # 1/T-scaled anchor tile
                pltpu.VMEM((tq, 1), jnp.float32),         # running max
                pltpu.VMEM((tq, 1), jnp.float32),         # running denominator
                pltpu.VMEM((tq, 1), jnp.float32),         # positive-logit sum
            ],
        ),
        compiler_params=pltpu.CompilerParams(
            dimension_semantics=("parallel", "arbitrary"),
            vmem_limit_bytes=_derive_vmem_limit(tq, tk, d_pad, comp_bytes, vmem_cap)),
        cost_estimate=cost,
    )(feat_p, feat_p, lbl_col, lbl_row, valid_row, pos_cnt_col)

    # Tiny epilogue in plain JAX: mean over the real anchors.
    return jnp.mean(per_anchor[:n, 0])


def _reference_supcon(features, labels, temperature=0.07):
    """Pure-JAX reference mirroring the PyTorch forward exactly (f32)."""
    bsz, n_views, dim = features.shape
    n = bsz * n_views
    labels_col = labels.reshape(-1, 1)
    mask = (labels_col == labels_col.T).astype(jnp.float32)            # [bsz,bsz]
    contrast_feature = jnp.transpose(features, (1, 0, 2)).reshape(n, dim)
    adc = jnp.matmul(contrast_feature, contrast_feature.T) / temperature
    logits_max = jnp.max(adc, axis=1, keepdims=True)
    logits = adc - logits_max
    mask = jnp.tile(mask, (n_views, n_views))                          # [N,N]
    logits_mask = 1.0 - jnp.eye(n, dtype=jnp.float32)
    mask = mask * logits_mask
    exp_logits = jnp.exp(logits) * logits_mask
    log_prob = logits - jnp.log(jnp.sum(exp_logits, axis=1, keepdims=True))
    loss = -(mask * log_prob).sum(1) / mask.sum(1)
    return loss.reshape(n_views, bsz).mean()


if __name__ == "__main__":
    key = jax.random.PRNGKey(0)
    k_feat, k_lab = jax.random.split(key)

    bsz, n_views, dim = 8, 2, 32
    features = jax.random.normal(k_feat, (bsz, n_views, dim), dtype=jnp.float32)
    # L2-normalize features (typical SupCon usage; purely for well-scaled logits)
    features = features / jnp.linalg.norm(features, axis=-1, keepdims=True)
    labels = jax.random.randint(k_lab, (bsz,), 0, 3, dtype=jnp.int32)

    ref = _reference_supcon(features, labels, temperature=0.07)

    # f32 compute path: bit-tight check against the PyTorch-equivalent reference.
    loss_f32 = supcon_loss(features, labels, temperature=0.07,
                           compute_dtype=jnp.float32)
    jax.block_until_ready(loss_f32)
    assert jnp.allclose(loss_f32, ref, rtol=1e-4, atol=1e-4), (loss_f32, ref)

    # bf16 default path: looser tolerance (bf16 feature tiles, f32 accumulation).
    loss_bf16 = supcon_loss(features, labels, temperature=0.07)
    jax.block_until_ready(loss_bf16)
    assert jnp.allclose(loss_bf16, ref, rtol=5e-2, atol=5e-2), (loss_bf16, ref)

    print("KERNEL_OK")
</pallas_src>

<mosaic_0001>
module attributes {stable_mosaic.version = 11 : i64} {
  func.func @_supcon_kernel(%arg0: i32, %arg1: i32, %arg2: memref<64x128xf32, #tpu.memory_space<vmem>>, %arg3: memref<128x128xf32, #tpu.memory_space<vmem>>, %arg4: memref<64x1xi32, #tpu.memory_space<vmem>>, %arg5: memref<1x128xi32, #tpu.memory_space<vmem>>, %arg6: memref<1x128xi32, #tpu.memory_space<vmem>>, %arg7: memref<64x1xf32, #tpu.memory_space<vmem>>, %arg8: memref<64x1xf32, #tpu.memory_space<vmem>>, %arg9: memref<64x128xf32, #tpu.memory_space<vmem>>, %arg10: memref<64x1xf32, #tpu.memory_space<vmem>>, %arg11: memref<64x1xf32, #tpu.memory_space<vmem>>, %arg12: memref<64x1xf32, #tpu.memory_space<vmem>>) attributes {dimension_semantics = [#tpu.dimension_semantics<parallel>, #tpu.dimension_semantics<arbitrary>], iteration_bounds = array<i64: 2, 1>, scalar_prefetch = 0 : i64, scratch_operands = 4 : i64, tpu.core_type = #tpu.core_type<tc>, window_params = [{transform_indices = @transform_0, window_bounds = array<i64: 64, 128>}, {transform_indices = @transform_1, window_bounds = array<i64: 128, 128>}, {transform_indices = @transform_2, window_bounds = array<i64: 64, 1>}, {transform_indices = @transform_3, window_bounds = array<i64: 1, 128>}, {transform_indices = @transform_4, window_bounds = array<i64: 1, 128>}, {transform_indices = @transform_5, window_bounds = array<i64: 64, 1>}, {transform_indices = @transform_6, window_bounds = array<i64: 64, 1>}]} {
    %c0_i32 = arith.constant 0 : i32
    %0 = arith.cmpi eq, %arg1, %c0_i32 : i32
    %1 = arith.extui %0 : i1 to i32
    %c0_i32_0 = arith.constant 0 : i32
    %2 = arith.cmpi ne, %1, %c0_i32_0 : i32
    scf.if %2 {
      %c0_22 = arith.constant 0 : index
      %c0_23 = arith.constant 0 : index
      %37 = vector.load %arg2[%c0_22, %c0_23] : memref<64x128xf32, #tpu.memory_space<vmem>>, vector<64x128xf32>
      %cst_24 = arith.constant 14.2857141 : f32
      %38 = vector.broadcast %cst_24 : f32 to vector<64x128xf32>
      %39 = arith.mulf %37, %38 : vector<64x128xf32>
      %c0_25 = arith.constant 0 : index
      %c0_26 = arith.constant 0 : index
      %40 = vector.load %arg9[%c0_25, %c0_26] : memref<64x128xf32, #tpu.memory_space<vmem>>, vector<64x128xf32>
      tpu.vector_store %arg9[%c0_25, %c0_26], %39 {strides = array<i32>} : memref<64x128xf32, #tpu.memory_space<vmem>>, vector<64x128xf32>,
      %cst_27 = arith.constant 0xFF800000 : f32
      %41 = vector.broadcast %cst_27 : f32 to vector<64x1xf32>
      %c0_28 = arith.constant 0 : index
      %c0_29 = arith.constant 0 : index
      %42 = vector.load %arg10[%c0_28, %c0_29] : memref<64x1xf32, #tpu.memory_space<vmem>>, vector<64x1xf32>
      tpu.vector_store %arg10[%c0_28, %c0_29], %41 {strides = array<i32>} : memref<64x1xf32, #tpu.memory_space<vmem>>, vector<64x1xf32>,
      %cst_30 = arith.constant 0.000000e+00 : f32
      %43 = vector.broadcast %cst_30 : f32 to vector<64x1xf32>
      %c0_31 = arith.constant 0 : index
      %c0_32 = arith.constant 0 : index
      %44 = vector.load %arg11[%c0_31, %c0_32] : memref<64x1xf32, #tpu.memory_space<vmem>>, vector<64x1xf32>
      tpu.vector_store %arg11[%c0_31, %c0_32], %43 {strides = array<i32>} : memref<64x1xf32, #tpu.memory_space<vmem>>, vector<64x1xf32>,
      %cst_33 = arith.constant 0.000000e+00 : f32
      %45 = vector.broadcast %cst_33 : f32 to vector<64x1xf32>
      %c0_34 = arith.constant 0 : index
      %c0_35 = arith.constant 0 : index
      %46 = vector.load %arg12[%c0_34, %c0_35] : memref<64x1xf32, #tpu.memory_space<vmem>>, vector<64x1xf32>
      tpu.vector_store %arg12[%c0_34, %c0_35], %45 {strides = array<i32>} : memref<64x1xf32, #tpu.memory_space<vmem>>, vector<64x1xf32>,
    } else {
    }
    %c0 = arith.constant 0 : index
    %c0_1 = arith.constant 0 : index
    %3 = vector.load %arg9[%c0, %c0_1] : memref<64x128xf32, #tpu.memory_space<vmem>>, vector<64x128xf32>
    %c0_2 = arith.constant 0 : index
    %c0_3 = arith.constant 0 : index
    %4 = vector.load %arg3[%c0_2, %c0_3] : memref<128x128xf32, #tpu.memory_space<vmem>>, vector<128x128xf32>
    %cst = arith.constant dense<0.000000e+00> : vector<64x128xf32>
    %5 = tpu.matmul %3, %4, %cst {dimension_numbers = #tpu.dot_dimension_numbers<[1], [1], [0], [0], [0, 0, 1, 0], [], []>} : vector<64x128xf32>, vector<128x128xf32>, vector<64x128xf32> -> vector<64x128xf32>
    %c0_4 = arith.constant 0 : index
    %c0_5 = arith.constant 0 : index
    %6 = vector.load %arg10[%c0_4, %c0_5] : memref<64x1xf32, #tpu.memory_space<vmem>>, vector<64x1xf32>
    %cst_6 = arith.constant dense<0xFF800000> : vector<64xf32>
    %7 = vector.multi_reduction <maximumf>, %5, %cst_6 [1] : vector<64x128xf32> to vector<64xf32>
    %8 = vector.shape_cast %7 : vector<64xf32> to vector<64x1xf32>
    %9 = arith.maximumf %6, %8 : vector<64x1xf32>
    %10 = arith.subf %6, %9 : vector<64x1xf32>
    %11 = math.exp %10 : vector<64x1xf32>
    %c0_7 = arith.constant 0 : index
    %c0_8 = arith.constant 0 : index
    %12 = vector.load %arg10[%c0_7, %c0_8] : memref<64x1xf32, #tpu.memory_space<vmem>>, vector<64x1xf32>
    tpu.vector_store %arg10[%c0_7, %c0_8], %9 {strides = array<i32>} : memref<64x1xf32, #tpu.memory_space<vmem>>, vector<64x1xf32>,
    %c0_9 = arith.constant 0 : index
    %c0_10 = arith.constant 0 : index
    %13 = vector.load %arg11[%c0_9, %c0_10] : memref<64x1xf32, #tpu.memory_space<vmem>>, vector<64x1xf32>
    %14 = arith.mulf %11, %13 : vector<64x1xf32>
    %c0_11 = arith.constant 0 : index
    %c0_12 = arith.constant 0 : index
    %15 = vector.load %arg4[%c0_11, %c0_12] : memref<64x1xi32, #tpu.memory_space<vmem>>, vector<64x1xi32>
    %c0_13 = arith.constant 0 : index
    %c0_14 = arith.constant 0 : index
    %16 = vector.load %arg5[%c0_13, %c0_14] : memref<1x128xi32, #tpu.memory_space<vmem>>, vector<1x128xi32>
    %17 = vector.broadcast %15 : vector<64x1xi32> to vector<64x128xi32>
    %18 = vector.broadcast %16 : vector<1x128xi32> to vector<64x128xi32>
    %19 = arith.cmpi eq, %17, %18 : vector<64x128xi32>
    %c64_i32 = arith.constant 64 : i32
    %20 = arith.muli %arg0, %c64_i32 : i32
    %c128_i32 = arith.constant 128 : i32
    %21 = arith.muli %arg1, %c128_i32 : i32
    %c64_i32_15 = arith.constant 64 : i32
    %22 = arith.addi %20, %c64_i32_15 : i32
    %23 = arith.cmpi slt, %21, %22 : i32
    %c128_i32_16 = arith.constant 128 : i32
    %24 = arith.addi %21, %c128_i32_16 : i32
    %25 = arith.cmpi slt, %20, %24 : i32
    %26 = arith.andi %23, %25 : i1
    %c0_i32_17 = arith.constant 0 : i32
    %27 = arith.cmpi eq, %arg1, %c0_i32_17 : i32
    %28 = arith.ori %26, %27 : i1
    %29 = arith.extui %28 : i1 to i32
    %c0_i32_18 = arith.constant 0 : i32
    %30 = arith.cmpi ne, %29, %c0_i32_18 : i32
    scf.if %30 {
      %37 = tpu.iota {dimensions = array<i32: 0>} : vector<64x128xi32>
      %38 = vector.broadcast %20 : i32 to vector<64x128xi32>
      %39 = arith.addi %38, %37 : vector<64x128xi32>
      %40 = tpu.iota {dimensions = array<i32: 1>} : vector<64x128xi32>
      %41 = vector.broadcast %21 : i32 to vector<64x128xi32>
      %42 = arith.addi %41, %40 : vector<64x128xi32>
      %43 = arith.cmpi ne, %39, %42 : vector<64x128xi32>
      %c0_22 = arith.constant 0 : index
      %c0_23 = arith.constant 0 : index
      %44 = vector.load %arg6[%c0_22, %c0_23] : memref<1x128xi32, #tpu.memory_space<vmem>>, vector<1x128xi32>
      %c0_i32_24 = arith.constant 0 : i32
      %45 = vector.broadcast %c0_i32_24 : i32 to vector<1x128xi32>
      %46 = arith.cmpi ne, %44, %45 : vector<1x128xi32>
      %47 = vector.broadcast %46 : vector<1x128xi1> to vector<64x128xi1>
      %48 = arith.andi %43, %47 : vector<64x128xi1>
      %49 = vector.broadcast %9 : vector<64x1xf32> to vector<64x128xf32>
      %50 = arith.subf %5, %49 : vector<64x128xf32>
      %51 = math.exp %50 : vector<64x128xf32>
      %cst_25 = arith.constant 0.000000e+00 : f32
      %52 = vector.broadcast %cst_25 : f32 to vector<64x128xf32>
      %53 = arith.select %48, %51, %52 : vector<64x128xi1>, vector<64x128xf32>
      %cst_26 = arith.constant dense<0.000000e+00> : vector<64xf32>
      %54 = vector.multi_reduction <add>, %53, %cst_26 [1] : vector<64x128xf32> to vector<64xf32>
      %55 = vector.shape_cast %54 : vector<64xf32> to vector<64x1xf32>
      %56 = arith.addf %14, %55 : vector<64x1xf32>
      %c0_27 = arith.constant 0 : index
      %c0_28 = arith.constant 0 : index
      %57 = vector.load %arg11[%c0_27, %c0_28] : memref<64x1xf32, #tpu.memory_space<vmem>>, vector<64x1xf32>
      tpu.vector_store %arg11[%c0_27, %c0_28], %56 {strides = array<i32>} : memref<64x1xf32, #tpu.memory_space<vmem>>, vector<64x1xf32>,
      %58 = arith.andi %19, %48 : vector<64x128xi1>
      %c0_29 = arith.constant 0 : index
      %c0_30 = arith.constant 0 : index
      %59 = vector.load %arg12[%c0_29, %c0_30] : memref<64x1xf32, #tpu.memory_space<vmem>>, vector<64x1xf32>
      %cst_31 = arith.constant 0.000000e+00 : f32
      %60 = vector.broadcast %cst_31 : f32 to vector<64x128xf32>
      %61 = arith.select %58, %5, %60 : vector<64x128xi1>, vector<64x128xf32>
      %cst_32 = arith.constant dense<0.000000e+00> : vector<64xf32>
      %62 = vector.multi_reduction <add>, %61, %cst_32 [1] : vector<64x128xf32> to vector<64xf32>
      %63 = vector.shape_cast %62 : vector<64xf32> to vector<64x1xf32>
      %64 = arith.addf %59, %63 : vector<64x1xf32>
      %c0_33 = arith.constant 0 : index
      %c0_34 = arith.constant 0 : index
      %65 = vector.load %arg12[%c0_33, %c0_34] : memref<64x1xf32, #tpu.memory_space<vmem>>, vector<64x1xf32>
      tpu.vector_store %arg12[%c0_33, %c0_34], %64 {strides = array<i32>} : memref<64x1xf32, #tpu.memory_space<vmem>>, vector<64x1xf32>,
    } else {
    }
    %true = arith.constant true
    %31 = arith.xori %28, %true : i1
    %32 = arith.extui %31 : i1 to i32
    %c0_i32_19 = arith.constant 0 : i32
    %33 = arith.cmpi ne, %32, %c0_i32_19 : i32
    scf.if %33 {
      %37 = vector.broadcast %9 : vector<64x1xf32> to vector<64x128xf32>
      %38 = arith.subf %5, %37 : vector<64x128xf32>
      %39 = math.exp %38 : vector<64x128xf32>
      %cst_22 = arith.constant dense<0.000000e+00> : vector<64xf32>
      %40 = vector.multi_reduction <add>, %39, %cst_22 [1] : vector<64x128xf32> to vector<64xf32>
      %41 = vector.shape_cast %40 : vector<64xf32> to vector<64x1xf32>
      %42 = arith.addf %14, %41 : vector<64x1xf32>
      %c0_23 = arith.constant 0 : index
      %c0_24 = arith.constant 0 : index
      %43 = vector.load %arg11[%c0_23, %c0_24] : memref<64x1xf32, #tpu.memory_space<vmem>>, vector<64x1xf32>
      tpu.vector_store %arg11[%c0_23, %c0_24], %42 {strides = array<i32>} : memref<64x1xf32, #tpu.memory_space<vmem>>, vector<64x1xf32>,
      %c0_25 = arith.constant 0 : index
      %c0_26 = arith.constant 0 : index
      %44 = vector.load %arg12[%c0_25, %c0_26] : memref<64x1xf32, #tpu.memory_space<vmem>>, vector<64x1xf32>
      %cst_27 = arith.constant 0.000000e+00 : f32
      %45 = vector.broadcast %cst_27 : f32 to vector<64x128xf32>
      %46 = arith.select %19, %5, %45 : vector<64x128xi1>, vector<64x128xf32>
      %cst_28 = arith.constant dense<0.000000e+00> : vector<64xf32>
      %47 = vector.multi_reduction <add>, %46, %cst_28 [1] : vector<64x128xf32> to vector<64xf32>
      %48 = vector.shape_cast %47 : vector<64xf32> to vector<64x1xf32>
      %49 = arith.addf %44, %48 : vector<64x1xf32>
      %c0_29 = arith.constant 0 : index
      %c0_30 = arith.constant 0 : index
      %50 = vector.load %arg12[%c0_29, %c0_30] : memref<64x1xf32, #tpu.memory_space<vmem>>, vector<64x1xf32>
      tpu.vector_store %arg12[%c0_29, %c0_30], %49 {strides = array<i32>} : memref<64x1xf32, #tpu.memory_space<vmem>>, vector<64x1xf32>,
    } else {
    }
    %c0_i32_20 = arith.constant 0 : i32
    %34 = arith.cmpi eq, %arg1, %c0_i32_20 : i32
    %35 = arith.extui %34 : i1 to i32
    %c0_i32_21 = arith.constant 0 : i32
    %36 = arith.cmpi ne, %35, %c0_i32_21 : i32
    scf.if %36 {
      %c0_22 = arith.constant 0 : index
      %c0_23 = arith.constant 0 : index
      %37 = vector.load %arg7[%c0_22, %c0_23] : memref<64x1xf32, #tpu.memory_space<vmem>>, vector<64x1xf32>
      %cst_24 = arith.constant 1.000000e+00 : f32
      %38 = vector.broadcast %cst_24 : f32 to vector<64x1xf32>
      %39 = arith.maximumf %37, %38 : vector<64x1xf32>
      %c0_25 = arith.constant 0 : index
      %c0_26 = arith.constant 0 : index
      %40 = vector.load %arg10[%c0_25, %c0_26] : memref<64x1xf32, #tpu.memory_space<vmem>>, vector<64x1xf32>
      %c0_27 = arith.constant 0 : index
      %c0_28 = arith.constant 0 : index
      %41 = vector.load %arg11[%c0_27, %c0_28] : memref<64x1xf32, #tpu.memory_space<vmem>>, vector<64x1xf32>
      %42 = math.log %41 : vector<64x1xf32>
      %43 = arith.addf %40, %42 : vector<64x1xf32>
      %c0_29 = arith.constant 0 : index
      %c0_30 = arith.constant 0 : index
      %44 = vector.load %arg12[%c0_29, %c0_30] : memref<64x1xf32, #tpu.memory_space<vmem>>, vector<64x1xf32>
      %45 = arith.divf %44, %39 : vector<64x1xf32>
      %46 = arith.subf %43, %45 : vector<64x1xf32>
      %c0_31 = arith.constant 0 : index
      %c0_32 = arith.constant 0 : index
      %47 = vector.load %arg8[%c0_31, %c0_32] : memref<64x1xf32, #tpu.memory_space<vmem>>, vector<64x1xf32>
      tpu.vector_store %arg8[%c0_31, %c0_32], %46 {strides = array<i32>} : memref<64x1xf32, #tpu.memory_space<vmem>>, vector<64x1xf32>,
    } else {
    }
    return
  }
  func.func @transform_0(%arg0: i32, %arg1: i32) -> (i32, i32) {
    %c0_i32 = arith.constant 0 : i32
    %c0_i32_0 = arith.constant 0 : i32
    return %arg0, %c0_i32 : i32, i32
  }
  func.func @transform_1(%arg0: i32, %arg1: i32) -> (i32, i32) {
    %c0_i32 = arith.constant 0 : i32
    %c0_i32_0 = arith.constant 0 : i32
    return %arg1, %c0_i32 : i32, i32
  }
  func.func @transform_2(%arg0: i32, %arg1: i32) -> (i32, i32) {
    %c0_i32 = arith.constant 0 : i32
    %c0_i32_0 = arith.constant 0 : i32
    return %arg0, %c0_i32 : i32, i32
  }
  func.func @transform_3(%arg0: i32, %arg1: i32) -> (i32, i32) {
    %c0_i32 = arith.constant 0 : i32
    %c0_i32_0 = arith.constant 0 : i32
    return %c0_i32, %arg1 : i32, i32
  }
  func.func @transform_4(%arg0: i32, %arg1: i32) -> (i32, i32) {
    %c0_i32 = arith.constant 0 : i32
    %c0_i32_0 = arith.constant 0 : i32
    return %c0_i32, %arg1 : i32, i32
  }
  func.func @transform_5(%arg0: i32, %arg1: i32) -> (i32, i32) {
    %c0_i32 = arith.constant 0 : i32
    %c0_i32_0 = arith.constant 0 : i32
    return %arg0, %c0_i32 : i32, i32
  }
  func.func @transform_6(%arg0: i32, %arg1: i32) -> (i32, i32) {
    %c0_i32 = arith.constant 0 : i32
    %c0_i32_0 = arith.constant 0 : i32
    return %arg0, %c0_i32 : i32, i32
  }
}

</mosaic_0001>

<llo_original>
// kernel: tpu_custom_call.1
$region0: #{tpu_custom_call.1}
  #allocation0 [shape = 'u32[]', space=smem, size = 0x4, offset = 0x4, fixed_abs, tag = 'smem constant byte address 0x4 - core index']
  #allocation1 [shape = 'u32[72,128]{1,0:T(1,128)}', space=vmem, size = 0x9000, scoped, tag = 'internal scratch']
  #allocation2 [shape = 'f32[64,128]{1,0:T(8,128)}', space=vmem, size = 0x8000, scoped, tag = 'scratch operand']
  #allocation3 [shape = 'f32[64,1]{1,0:T(8,128)}', space=vmem, size = 0x8000, scoped, tag = 'scratch operand']
  #allocation4 [shape = 'f32[64,1]{1,0:T(8,128)}', space=vmem, size = 0x8000, scoped, tag = 'scratch operand']
  #allocation5 [shape = 'f32[64,1]{1,0:T(8,128)}', space=vmem, size = 0x8000, scoped, tag = 'scratch operand']
  %s0 = inlined_call_operand.vmem [shape: f32[128,128], index: 0, kind: input, shape index: {}]
  %s1 = inlined_call_operand.vmem [shape: f32[128,128], index: 1, kind: input, shape index: {}]
  %s2 = inlined_call_operand.vmem [shape: s32[128,1], index: 2, kind: input, shape index: {}]
  %s3 = inlined_call_operand.vmem [shape: s32[1,128], index: 3, kind: input, shape index: {}]
  %s4 = inlined_call_operand.vmem [shape: s32[1,128], index: 4, kind: input, shape index: {}]
  %s5 = inlined_call_operand.vmem [shape: f32[128,1], index: 5, kind: input, shape index: {}]
  %s6 = inlined_call_operand.vmem [shape: f32[128,1], index: 6, kind: output, shape index: {}]
  %s7 = sld [smem:[#allocation0]]
  $region73: #{tpu_custom_call.1} parent=0
    _
  %s9 = ssub.s32 1, %s7
  %s10 = scalar_select 0, %s9, %s7
  loop: start=0, step=1, limit=4
  $region2: #{tpu_custom_call.1} parent=0 // loop_pre_header
    _
  $region3: #{tpu_custom_call.1} parent=0 // loop_header
    %s12 = sphi 0, %s16
    %p13 = scmp.ge.s32.totalorder %s12, 4
    %s19 = sphi 0, %s31
    %s20 = sphi 0, %s27
    %s21 = sphi 0, %s19
    %s22 = sphi 0, %s20
    %s23 = sphi 0, %s21
    %s24 = sphi 0, %s22
    %s34 = sphi 0, %s36
    %s37 = sphi 0, %s34
    %s38 = sphi 0, %s37
    %s54 = sphi 0, %s38
    %s60 = sphi 0, %s62
    %s63 = sphi 0, %s60
    %s64 = sphi 0, %s63
    %s80 = sphi 0, %s64
    %s86 = sphi 0, %s88
    %s89 = sphi 0, %s86
    %s90 = sphi 0, %s89
    %s106 = sphi 0, %s90
    %s112 = sphi 0, %s114
    %s115 = sphi 0, %s112
    %s116 = sphi 0, %s115
    %s132 = sphi 0, %s116
    %s138 = sphi 0, %s140
    %s141 = sphi 0, %s138
    %s142 = sphi 0, %s141
    %s158 = sphi 0, %s142
    %s164 = sphi 0, %s166
    %s167 = sphi 0, %s164
    %s168 = sphi 0, %s167
    %s184 = sphi 0, %s168
    %s190 = sphi 0, %s192
    %s193 = sphi 0, %s190
    %s194 = sphi 0, %s193
    %s210 = sphi 0, %s194
  $region4: #{tpu_custom_call.1} parent=0 // loop_header_branch
    %15 = sbr.rel (%p13) target = $region8
  $region5: #{tpu_custom_call.1} parent=0 // loop_body
    %s17 = ssub.s32 %s12, 1
    %s18 = ssub.s32 %s12, 2
    %s25 = sadd.s32 1, %s20
    %p26 = scmp.ge.s32.totalorder %s25, 1
    %s27 = scalar_select %p26, 0, %s25
    %s28 = sadd.s32 1, %s19
    %s29 = scalar_select %p26, %s28, %s19
    %p30 = scmp.ge.s32.totalorder %s29, 2
    %s31 = scalar_select %p30, 0, %s29
    %s32 = ssub.s32 %s19, %s31
    %p33 = scmp.eq.s32.totalorder %s32, 0
    %s35 = sadd.s32 %s34, 1
    %s36 = scalar_select %p33, %s34, %s35
    %p39 = pneg %p33
    %p40 = scmp.eq.s32.totalorder %s12, 1
    %p41 = por %p39, %p40
    %p42 = scmp.ne.s32.totalorder %s34, %s37
    %p43 = scmp.eq.s32.totalorder %s12, 0
    %p44 = por %p42, %p43
    %p45 = scmp.ne.s32.totalorder %s34, %s37
    %p46 = scmp.eq.s32.totalorder %s17, 1
    %p47 = por %p45, %p46
    %p48 = scmp.ne.s32.totalorder %s37, %s38
    %p49 = scmp.eq.s32.totalorder %s17, 0
    %p50 = por %p48, %p49
    %p51 = scmp.ne.s32.totalorder %s37, %s38
    %p52 = scmp.eq.s32.totalorder %s18, 1
    %p53 = por %p51, %p52
    %p55 = scmp.ne.s32.totalorder %s38, %s54
    %p56 = scmp.eq.s32.totalorder %s18, 0
    %p57 = por %p55, %p56
    %s58 = ssub.s32 %s20, %s27
    %p59 = scmp.eq.s32.totalorder %s58, 0
    %s61 = sadd.s32 %s60, 1
    %s62 = scalar_select %p59, %s60, %s61
    %p65 = pneg %p59
    %p66 = scmp.eq.s32.totalorder %s12, 1
    %p67 = por %p65, %p66
    %p68 = scmp.ne.s32.totalorder %s60, %s63
    %p69 = scmp.eq.s32.totalorder %s12, 0
    %p70 = por %p68, %p69
    %p71 = scmp.ne.s32.totalorder %s60, %s63
    %p72 = scmp.eq.s32.totalorder %s17, 1
    %p73 = por %p71, %p72
    %p74 = scmp.ne.s32.totalorder %s63, %s64
    %p75 = scmp.eq.s32.totalorder %s17, 0
    %p76 = por %p74, %p75
    %p77 = scmp.ne.s32.totalorder %s63, %s64
    %p78 = scmp.eq.s32.totalorder %s18, 1
    %p79 = por %p77, %p78
    %p81 = scmp.ne.s32.totalorder %s64, %s80
    %p82 = scmp.eq.s32.totalorder %s18, 0
    %p83 = por %p81, %p82
    %s84 = ssub.s32 %s19, %s31
    %p85 = scmp.eq.s32.totalorder %s84, 0
    %s87 = sadd.s32 %s86, 1
    %s88 = scalar_select %p85, %s86, %s87
    %p91 = pneg %p85
    %p92 = scmp.eq.s32.totalorder %s12, 1
    %p93 = por %p91, %p92
    %p94 = scmp.ne.s32.totalorder %s86, %s89
    %p95 = scmp.eq.s32.totalorder %s12, 0
    %p96 = por %p94, %p95
    %p97 = scmp.ne.s32.totalorder %s86, %s89
    %p98 = scmp.eq.s32.totalorder %s17, 1
    %p99 = por %p97, %p98
    %p100 = scmp.ne.s32.totalorder %s89, %s90
    %p101 = scmp.eq.s32.totalorder %s17, 0
    %p102 = por %p100, %p101
    %p103 = scmp.ne.s32.totalorder %s89, %s90
    %p104 = scmp.eq.s32.totalorder %s18, 1
    %p105 = por %p103, %p104
    %p107 = scmp.ne.s32.totalorder %s90, %s106
    %p108 = scmp.eq.s32.totalorder %s18, 0
    %p109 = por %p107, %p108
    %s110 = ssub.s32 %s20, %s27
    %p111 = scmp.eq.s32.totalorder %s110, 0
    %s113 = sadd.s32 %s112, 1
    %s114 = scalar_select %p111, %s112, %s113
    %p117 = pneg %p111
    %p118 = scmp.eq.s32.totalorder %s12, 1
    %p119 = por %p117, %p118
    %p120 = scmp.ne.s32.totalorder %s112, %s115
    %p121 = scmp.eq.s32.totalorder %s12, 0
    %p122 = por %p120, %p121
    %p123 = scmp.ne.s32.totalorder %s112, %s115
    %p124 = scmp.eq.s32.totalorder %s17, 1
    %p125 = por %p123, %p124
    %p126 = scmp.ne.s32.totalorder %s115, %s116
    %p127 = scmp.eq.s32.totalorder %s17, 0
    %p128 = por %p126, %p127
    %p129 = scmp.ne.s32.totalorder %s115, %s116
    %p130 = scmp.eq.s32.totalorder %s18, 1
    %p131 = por %p129, %p130
    %p133 = scmp.ne.s32.totalorder %s116, %s132
    %p134 = scmp.eq.s32.totalorder %s18, 0
    %p135 = por %p133, %p134
    %s136 = ssub.s32 %s20, %s27
    %p137 = scmp.eq.s32.totalorder %s136, 0
    %s139 = sadd.s32 %s138, 1
    %s140 = scalar_select %p137, %s138, %s139
    %p143 = pneg %p137
    %p144 = scmp.eq.s32.totalorder %s12, 1
    %p145 = por %p143, %p144
    %p146 = scmp.ne.s32.totalorder %s138, %s141
    %p147 = scmp.eq.s32.totalorder %s12, 0
    %p148 = por %p146, %p147
    %p149 = scmp.ne.s32.totalorder %s138, %s141
    %p150 = scmp.eq.s32.totalorder %s17, 1
    %p151 = por %p149, %p150
    %p152 = scmp.ne.s32.totalorder %s141, %s142
    %p153 = scmp.eq.s32.totalorder %s17, 0
    %p154 = por %p152, %p153
    %p155 = scmp.ne.s32.totalorder %s141, %s142
    %p156 = scmp.eq.s32.totalorder %s18, 1
    %p157 = por %p155, %p156
    %p159 = scmp.ne.s32.totalorder %s142, %s158
    %p160 = scmp.eq.s32.totalorder %s18, 0
    %p161 = por %p159, %p160
    %s162 = ssub.s32 %s19, %s31
    %p163 = scmp.eq.s32.totalorder %s162, 0
    %s165 = sadd.s32 %s164, 1
    %s166 = scalar_select %p163, %s164, %s165
    %p169 = pneg %p163
    %p170 = scmp.eq.s32.totalorder %s12, 1
    %p171 = por %p169, %p170
    %p172 = scmp.ne.s32.totalorder %s164, %s167
    %p173 = scmp.eq.s32.totalorder %s12, 0
    %p174 = por %p172, %p173
    %p175 = scmp.ne.s32.totalorder %s164, %s167
    %p176 = scmp.eq.s32.totalorder %s17, 1
    %p177 = por %p175, %p176
    %p178 = scmp.ne.s32.totalorder %s167, %s168
    %p179 = scmp.eq.s32.totalorder %s17, 0
    %p180 = por %p178, %p179
    %p181 = scmp.ne.s32.totalorder %s167, %s168
    %p182 = scmp.eq.s32.totalorder %s18, 1
    %p183 = por %p181, %p182
    %p185 = scmp.ne.s32.totalorder %s168, %s184
    %p186 = scmp.eq.s32.totalorder %s18, 0
    %p187 = por %p185, %p186
    %s188 = ssub.s32 %s19, %s31
    %p189 = scmp.eq.s32.totalorder %s188, 0
    %s191 = sadd.s32 %s190, 1
    %s192 = scalar_select %p189, %s190, %s191
    %p195 = pneg %p189
    %p196 = scmp.eq.s32.totalorder %s12, 1
    %p197 = por %p195, %p196
    %p198 = scmp.ne.s32.totalorder %s190, %s193
    %p199 = scmp.eq.s32.totalorder %s12, 0
    %p200 = por %p198, %p199
    %p201 = scmp.ne.s32.totalorder %s190, %s193
    %p202 = scmp.eq.s32.totalorder %s17, 1
    %p203 = por %p201, %p202
    %p204 = scmp.ne.s32.totalorder %s193, %s194
    %p205 = scmp.eq.s32.totalorder %s17, 0
    %p206 = por %p204, %p205
    %p207 = scmp.ne.s32.totalorder %s193, %s194
    %p208 = scmp.eq.s32.totalorder %s18, 1
    %p209 = por %p207, %p208
    %p211 = scmp.ne.s32.totalorder %s194, %s210
    %p212 = scmp.eq.s32.totalorder %s18, 0
    %p213 = por %p211, %p212
    %p214 = scmp.le.s32.totalorder 1, %s12
    %p215 = scmp.lt.s32.totalorder %s12, 3
    %p216 = pnand %p214, %p215
    %p217 = pneg %p216
    // Predicated region
    $region9: #{tpu_custom_call.1} parent=5 // pred_check
      _
    $region10: #{tpu_custom_call.1} parent=5 // pred_check_branch
      %219 = sbr.rel (%p216) target = $region12
    $region11: #{tpu_custom_call.1} parent=5 // pred_region
      %s220 = ssub.s32 %s12, 1
      // Predicated region
      $region13: #{tpu_custom_call.1} parent=11 // pred_check
        %p221 = pneg %p76
      $region14: #{tpu_custom_call.1} parent=11 // pred_check_branch
        %223 = sbr.rel (%p221) target = $region16
      $region15: #{tpu_custom_call.1} parent=11 // pred_region
        %s224 = smul.u32 16, %s22
        %p225 = scmp.lt.s32.totalorder %s224, 15
        %s226 = scalar_select %p225, %s224, 15
        %s227 = smul.addr %s226, 8
        %s228 = scalar_lea.vmem %s1, %s227
        %s229 = smul.u32 16, %s22
      $region16: #{tpu_custom_call.1} parent=11 // pred_fallthru
        _
      // Predicated region
      $region17: #{tpu_custom_call.1} parent=11 // pred_check
        %p230 = pneg %p128
      $region18: #{tpu_custom_call.1} parent=11 // pred_check_branch
        %232 = sbr.rel (%p230) target = $region20
      $region19: #{tpu_custom_call.1} parent=11 // pred_region
        %p233 = scmp.lt.s32.totalorder %s22, 0
        %s234 = scalar_select %p233, %s22, 0
        %s235 = scalar_lea.vmem %s3, %s234
      $region20: #{tpu_custom_call.1} parent=11 // pred_fallthru
        _
      // Predicated region
      $region21: #{tpu_custom_call.1} parent=11 // pred_check
        %p236 = pneg %p154
      $region22: #{tpu_custom_call.1} parent=11 // pred_check_branch
        %238 = sbr.rel (%p236) target = $region24
      $region23: #{tpu_custom_call.1} parent=11 // pred_region
        %p239 = scmp.lt.s32.totalorder %s22, 0
        %s240 = scalar_select %p239, %s22, 0
        %s241 = scalar_lea.vmem %s4, %s240
      $region24: #{tpu_custom_call.1} parent=11 // pred_fallthru
        _
    $region12: #{tpu_custom_call.1} parent=5 // pred_fallthru
      _
    %p242 = scmp.lt.s32.totalorder %s12, 2
    // Predicated region
    $region25: #{tpu_custom_call.1} parent=5 // pred_check
      %p243 = pneg %p242
    $region26: #{tpu_custom_call.1} parent=5 // pred_check_branch
      %245 = sbr.rel (%p243) target = $region28
    $region27: #{tpu_custom_call.1} parent=5 // pred_region
      // Predicated region
      $region29: #{tpu_custom_call.1} parent=27 // pred_check
        %p246 = pneg %p44
      $region30: #{tpu_custom_call.1} parent=27 // pred_check_branch
        %248 = sbr.rel (%p246) target = $region32
      $region31: #{tpu_custom_call.1} parent=27 // pred_region
        %s249 = smul.u32 8, %s19
        %p250 = scmp.lt.s32.totalorder %s249, 15
        %s251 = scalar_select %p250, %s249, 15
        %s252 = smul.addr %s251, 8
        %s253 = scalar_lea.vmem %s0, %s252
        %s254 = smul.u32 8, %s19
      $region32: #{tpu_custom_call.1} parent=27 // pred_fallthru
        _
      // Predicated region
      $region33: #{tpu_custom_call.1} parent=27 // pred_check
        %p255 = pneg %p96
      $region34: #{tpu_custom_call.1} parent=27 // pred_check_branch
        %257 = sbr.rel (%p255) target = $region36
      $region35: #{tpu_custom_call.1} parent=27 // pred_region
        %s258 = smul.u32 8, %s19
        %p259 = scmp.lt.s32.totalorder %s258, 15
        %s260 = scalar_select %p259, %s258, 15
        %s261 = smul.addr %s260, 8
        %s262 = scalar_lea.vmem %s2, %s261
        %s263 = smul.u32 8, %s19
      $region36: #{tpu_custom_call.1} parent=27 // pred_fallthru
        _
      // Predicated region
      $region37: #{tpu_custom_call.1} parent=27 // pred_check
        %p264 = pneg %p174
      $region38: #{tpu_custom_call.1} parent=27 // pred_check_branch
        %266 = sbr.rel (%p264) target = $region40
      $region39: #{tpu_custom_call.1} parent=27 // pred_region
        %s267 = smul.u32 8, %s19
        %p268 = scmp.lt.s32.totalorder %s267, 15
        %s269 = scalar_select %p268, %s267, 15
        %s270 = smul.addr %s269, 8
        %s271 = scalar_lea.vmem %s5, %s270
        %s272 = smul.u32 8, %s19
      $region40: #{tpu_custom_call.1} parent=27 // pred_fallthru
        _
    $region28: #{tpu_custom_call.1} parent=5 // pred_fallthru
      _
    %p273 = scmp.le.s32.totalorder 1, %s12
    %p274 = scmp.lt.s32.totalorder %s12, 3
    %p275 = pnand %p273, %p274
    %p276 = pneg %p275
    // Predicated region
    $region41: #{tpu_custom_call.1} parent=5 // pred_check
      _
    $region42: #{tpu_custom_call.1} parent=5 // pred_check_branch
      %278 = sbr.rel (%p275) target = $region44
    $region43: #{tpu_custom_call.1} parent=5 // pred_region
      %s279 = ssub.s32 %s12, 1
      %s280 = smul.u32 8, %s21
      %p281 = scmp.lt.s32.totalorder %s280, 15
      %s282 = scalar_select %p281, %s280, 15
      %s283 = smul.addr %s282, 8
      %s284 = scalar_lea.vmem %s0, %s283
      %p285 = pneg %p50
      %p286 = pneg %p47
      %s287 = smul.u32 16, %s22
      %p288 = scmp.lt.s32.totalorder %s287, 15
      %s289 = scalar_select %p288, %s287, 15
      %s290 = smul.addr %s289, 8
      %s291 = scalar_lea.vmem %s1, %s290
      %p292 = pneg %p76
      %p293 = pneg %p73
      %s294 = smul.u32 8, %s21
      %p295 = scmp.lt.s32.totalorder %s294, 15
      %s296 = scalar_select %p295, %s294, 15
      %s297 = smul.addr %s296, 8
      %s298 = scalar_lea.vmem %s2, %s297
      %p299 = pneg %p102
      %p300 = pneg %p99
      %p301 = scmp.lt.s32.totalorder %s22, 0
      %s302 = scalar_select %p301, %s22, 0
      %s303 = scalar_lea.vmem %s3, %s302
      %p304 = pneg %p128
      %p305 = pneg %p125
      %p306 = scmp.lt.s32.totalorder %s22, 0
      %s307 = scalar_select %p306, %s22, 0
      %s308 = scalar_lea.vmem %s4, %s307
      %p309 = pneg %p154
      %p310 = pneg %p151
      %s311 = smul.u32 8, %s21
      %p312 = scmp.lt.s32.totalorder %s311, 15
      %s313 = scalar_select %p312, %s311, 15
      %s314 = smul.addr %s313, 8
      %s315 = scalar_lea.vmem %s5, %s314
      %p316 = pneg %p180
      %p317 = pneg %p177
      %p318 = pneg %p206
      %p319 = pneg %p203
      %s320 = smul.u32 8, %s21
      %p321 = scmp.lt.s32.totalorder %s320, 15
      %s322 = scalar_select %p321, %s320, 15
      %s323 = smul.addr %s322, 8
      %s324 = scalar_lea.vmem %s6, %s323
      %s325 = smul.u32 8, %s21
      %p326 = scmp.lt.s32.totalorder %s325, 15
      %s327 = scalar_select %p326, %s325, 15
      %s328 = smul.addr %s327, 8
      %s329 = scalar_lea.vmem %s0, %s328
      %s330 = smul.u32 8, %s21
      %s331 = smul.u32 16, %s22
      %p332 = scmp.lt.s32.totalorder %s331, 15
      %s333 = scalar_select %p332, %s331, 15
      %s334 = smul.addr %s333, 8
      %s335 = scalar_lea.vmem %s1, %s334
      %s336 = smul.u32 16, %s22
      %s337 = smul.u32 8, %s21
      %p338 = scmp.lt.s32.totalorder %s337, 15
      %s339 = scalar_select %p338, %s337, 15
      %s340 = smul.addr %s339, 8
      %s341 = scalar_lea.vmem %s2, %s340
      %s342 = smul.u32 8, %s21
      %p343 = scmp.lt.s32.totalorder %s22, 0
      %s344 = scalar_select %p343, %s22, 0
      %s345 = scalar_lea.vmem %s3, %s344
      %p346 = scmp.lt.s32.totalorder %s22, 0
      %s347 = scalar_select %p346, %s22, 0
      %s348 = scalar_lea.vmem %s4, %s347
      %s349 = smul.u32 8, %s21
      %p350 = scmp.lt.s32.totalorder %s349, 15
      %s351 = scalar_select %p350, %s349, 15
      %s352 = smul.addr %s351, 8
      %s353 = scalar_lea.vmem %s5, %s352
      %s354 = smul.u32 8, %s21
      %s355 = smul.u32 8, %s21
      %p356 = scmp.lt.s32.totalorder %s355, 15
      %s357 = scalar_select %p356, %s355, 15
      %s358 = smul.addr %s357, 8
      %s359 = scalar_lea.vmem %s6, %s358
      %s360 = smul.u32 8, %s21
      %p361 = scmp.eq.s32.totalorder %s22, 0
      // Predicated region
      $region45: #{tpu_custom_call.1} parent=43 // pred_check
        %p362 = pneg %p361
      $region46: #{tpu_custom_call.1} parent=43 // pred_check_branch
        %364 = sbr.rel (%p362) target = $region48
      $region47: #{tpu_custom_call.1} parent=43 // pred_region
        %v365 = vld [vmem:[%s329] sm:$0xff]
        %v366 = vld [vmem:[%s329 + $0x8] sm:$0xff]
        %v367 = vld [vmem:[%s329 + $0x10] sm:$0xff]
        %v368 = vld [vmem:[%s329 + $0x18] sm:$0xff]
        %v369 = vld [vmem:[%s329 + $0x20] sm:$0xff]
        %v370 = vld [vmem:[%s329 + $0x28] sm:$0xff]
        %v371 = vld [vmem:[%s329 + $0x30] sm:$0xff]
        %v372 = vld [vmem:[%s329 + $0x38] sm:$0xff]
        %v373 = vmul.f32 %v365, 14.285714
        %v374 = vmul.f32 %v366, 14.285714
        %v375 = vmul.f32 %v367, 14.285714
        %v376 = vmul.f32 %v368, 14.285714
        %v377 = vmul.f32 %v369, 14.285714
        %v378 = vmul.f32 %v370, 14.285714
        %v379 = vmul.f32 %v371, 14.285714
        %v380 = vmul.f32 %v372, 14.285714
        %381 = vst [vmem:[#allocation2] sm:$0xff] %v373
        %382 = vst [vmem:[#allocation2 + $0x8] sm:$0xff] %v374
        %383 = vst [vmem:[#allocation2 + $0x10] sm:$0xff] %v375
        %384 = vst [vmem:[#allocation2 + $0x18] sm:$0xff] %v376
        %385 = vst [vmem:[#allocation2 + $0x20] sm:$0xff] %v377
        %386 = vst [vmem:[#allocation2 + $0x28] sm:$0xff] %v378
        %387 = vst [vmem:[#allocation2 + $0x30] sm:$0xff] %v379
        %388 = vst [vmem:[#allocation2 + $0x38] sm:$0xff] %v380
        %vm389 = vcmask 7168
        %390 = vst.msk [vmem:[#allocation3] sm:$0xff] %vm389, -inf
        %391 = vst.msk [vmem:[#allocation3 + $0x8] sm:$0xff] %vm389, -inf
        %392 = vst.msk [vmem:[#allocation3 + $0x10] sm:$0xff] %vm389, -inf
        %393 = vst.msk [vmem:[#allocation3 + $0x18] sm:$0xff] %vm389, -inf
        %394 = vst.msk [vmem:[#allocation3 + $0x20] sm:$0xff] %vm389, -inf
        %395 = vst.msk [vmem:[#allocation3 + $0x28] sm:$0xff] %vm389, -inf
        %396 = vst.msk [vmem:[#allocation3 + $0x30] sm:$0xff] %vm389, -inf
        %397 = vst.msk [vmem:[#allocation3 + $0x38] sm:$0xff] %vm389, -inf
        %398 = vst.msk [vmem:[#allocation4] sm:$0xff] %vm389, 0.0
        %399 = vst.msk [vmem:[#allocation4 + $0x8] sm:$0xff] %vm389, 0.0
        %400 = vst.msk [vmem:[#allocation4 + $0x10] sm:$0xff] %vm389, 0.0
        %401 = vst.msk [vmem:[#allocation4 + $0x18] sm:$0xff] %vm389, 0.0
        %402 = vst.msk [vmem:[#allocation4 + $0x20] sm:$0xff] %vm389, 0.0
        %403 = vst.msk [vmem:[#allocation4 + $0x28] sm:$0xff] %vm389, 0.0
        %404 = vst.msk [vmem:[#allocation4 + $0x30] sm:$0xff] %vm389, 0.0
        %405 = vst.msk [vmem:[#allocation4 + $0x38] sm:$0xff] %vm389, 0.0
        %406 = vst.msk [vmem:[#allocation5] sm:$0xff] %vm389, 0.0
        %407 = vst.msk [vmem:[#allocation5 + $0x8] sm:$0xff] %vm389, 0.0
        %408 = vst.msk [vmem:[#allocation5 + $0x10] sm:$0xff] %vm389, 0.0
        %409 = vst.msk [vmem:[#allocation5 + $0x18] sm:$0xff] %vm389, 0.0
        %410 = vst.msk [vmem:[#allocation5 + $0x20] sm:$0xff] %vm389, 0.0
        %411 = vst.msk [vmem:[#allocation5 + $0x28] sm:$0xff] %vm389, 0.0
        %412 = vst.msk [vmem:[#allocation5 + $0x30] sm:$0xff] %vm389, 0.0
        %413 = vst.msk [vmem:[#allocation5 + $0x38] sm:$0xff] %vm389, 0.0
      $region48: #{tpu_custom_call.1} parent=43 // pred_fallthru
        _
      %v414 = vld [vmem:[#allocation2] sm:$0xff]
      %v415 = vld [vmem:[#allocation2 + $0x8] sm:$0xff]
      %v416 = vld [vmem:[#allocation2 + $0x10] sm:$0xff]
      %v417 = vld [vmem:[#allocation2 + $0x18] sm:$0xff]
      %v418 = vld [vmem:[#allocation2 + $0x20] sm:$0xff]
      %v419 = vld [vmem:[#allocation2 + $0x28] sm:$0xff]
      %v420 = vld [vmem:[#allocation2 + $0x30] sm:$0xff]
      %v421 = vld [vmem:[#allocation2 + $0x38] sm:$0xff]
      %v422 = vld [vmem:[%s335] sm:$0xff]
      %v423 = vld [vmem:[%s335 + $0x8] sm:$0xff]
      %v424 = vld [vmem:[%s335 + $0x10] sm:$0xff]
      %v425 = vld [vmem:[%s335 + $0x18] sm:$0xff]
      %v426 = vld [vmem:[%s335 + $0x20] sm:$0xff]
      %v427 = vld [vmem:[%s335 + $0x28] sm:$0xff]
      %v428 = vld [vmem:[%s335 + $0x30] sm:$0xff]
      %v429 = vld [vmem:[%s335 + $0x38] sm:$0xff]
      %v430 = vld [vmem:[%s335 + $0x40] sm:$0xff]
      %v431 = vld [vmem:[%s335 + $0x48] sm:$0xff]
      %v432 = vld [vmem:[%s335 + $0x50] sm:$0xff]
      %v433 = vld [vmem:[%s335 + $0x58] sm:$0xff]
      %v434 = vld [vmem:[%s335 + $0x60] sm:$0xff]
      %v435 = vld [vmem:[%s335 + $0x68] sm:$0xff]
      %v436 = vld [vmem:[%s335 + $0x70] sm:$0xff]
      %v437 = vld [vmem:[%s335 + $0x78] sm:$0xff]
      %438 = vmatpush.xpose.msra.mxu0 %v437
      %439 = vmatpush.xpose.msra.mxu0 %v436
      %440 = vmatpush.xpose.msra.mxu0 %v435
      %441 = vmatpush.xpose.msra.mxu0 %v434
      %442 = vmatpush.xpose.msra.mxu0 %v433
      %443 = vmatpush.xpose.msra.mxu0 %v432
      %444 = vmatpush.xpose.msra.mxu0 %v431
      %445 = vmatpush.xpose.msra.mxu0 %v430
      %446 = vmatpush.xpose.msra.mxu0 %v429
      %447 = vmatpush.xpose.msra.mxu0 %v428
      %448 = vmatpush.xpose.msra.mxu0 %v427
      %449 = vmatpush.xpose.msra.mxu0 %v426
      %450 = vmatpush.xpose.msra.mxu0 %v425
      %451 = vmatpush.xpose.msra.mxu0 %v424
      %452 = vmatpush.xpose.msra.mxu0 %v423
      %453 = vmatpush.xpose.msra.mxu0 %v422
      %454 = vmatmul.f32.gmra.mxu0 %v414
      %v455 = vpop.f32.mrf.mxu0
      %v456 = vadd.f32 0.0, %v455
      %457 = vmatmul.f32.gmra.mxu0 %v415
      %v458 = vpop.f32.mrf.mxu0
      %v459 = vadd.f32 0.0, %v458
      %460 = vmatmul.f32.gmra.mxu0 %v416
      %v461 = vpop.f32.mrf.mxu0
      %v462 = vadd.f32 0.0, %v461
      %463 = vmatmul.f32.gmra.mxu0 %v417
      %v464 = vpop.f32.mrf.mxu0
      %v465 = vadd.f32 0.0, %v464
      %466 = vmatmul.f32.gmra.mxu0 %v418
      %v467 = vpop.f32.mrf.mxu0
      %v468 = vadd.f32 0.0, %v467
      %469 = vmatmul.f32.gmra.mxu0 %v419
      %v470 = vpop.f32.mrf.mxu0
      %v471 = vadd.f32 0.0, %v470
      %472 = vmatmul.f32.gmra.mxu0 %v420
      %v473 = vpop.f32.mrf.mxu0
      %v474 = vadd.f32 0.0, %v473
      %475 = vmatmul.f32.gmra.mxu0 %v421
      %v476 = vpop.f32.mrf.mxu0
      %v477 = vadd.f32 0.0, %v476
      %478 = vdwg.mxu0
      %v479 = vld [vmem:[#allocation3] sm:$0xff]
      %v480 = vld [vmem:[#allocation3 + $0x8] sm:$0xff]
      %v481 = vld [vmem:[#allocation3 + $0x10] sm:$0xff]
      %v482 = vld [vmem:[#allocation3 + $0x18] sm:$0xff]
      %v483 = vld [vmem:[#allocation3 + $0x20] sm:$0xff]
      %v484 = vld [vmem:[#allocation3 + $0x28] sm:$0xff]
      %v485 = vld [vmem:[#allocation3 + $0x30] sm:$0xff]
      %v486 = vld [vmem:[#allocation3 + $0x38] sm:$0xff]
      %487 = vmax.xlane.f32.xlu0 %v456
      %v488 = vpop.xlane.xlu0 %487
      %489 = vmax.xlane.f32.xlu0 %v459
      %v490 = vpop.xlane.xlu0 %489
      %491 = vmax.xlane.f32.xlu0 %v462
      %v492 = vpop.xlane.xlu0 %491
      %493 = vmax.xlane.f32.xlu0 %v465
      %v494 = vpop.xlane.xlu0 %493
      %495 = vmax.xlane.f32.xlu0 %v468
      %v496 = vpop.xlane.xlu0 %495
      %497 = vmax.xlane.f32.xlu0 %v471
      %v498 = vpop.xlane.xlu0 %497
      %499 = vmax.xlane.f32.xlu0 %v474
      %v500 = vpop.xlane.xlu0 %499
      %501 = vmax.xlane.f32.xlu0 %v477
      %v502 = vpop.xlane.xlu0 %501
      %v503 = vmax.f32 %v479, %v488
      %v504 = vmax.f32 %v480, %v490
      %v505 = vmax.f32 %v481, %v492
      %v506 = vmax.f32 %v482, %v494
      %v507 = vmax.f32 %v483, %v496
      %v508 = vmax.f32 %v484, %v498
      %v509 = vmax.f32 %v485, %v500
      %v510 = vmax.f32 %v486, %v502
      %v511 = vsub.f32 %v479, %v503
      %v512 = vsub.f32 %v480, %v504
      %v513 = vsub.f32 %v481, %v505
      %v514 = vsub.f32 %v482, %v506
      %v515 = vsub.f32 %v483, %v507
      %v516 = vsub.f32 %v484, %v508
      %v517 = vsub.f32 %v485, %v509
      %v518 = vsub.f32 %v486, %v510
      %v519 = vmul.f32 %v511, 1.442695
      %v520 = vpow.pop %v519
      %v521 = vmul.f32 %v512, 1.442695
      %v522 = vpow.pop %v521
      %v523 = vmul.f32 %v513, 1.442695
      %v524 = vpow.pop %v523
      %v525 = vmul.f32 %v514, 1.442695
      %v526 = vpow.pop %v525
      %v527 = vmul.f32 %v515, 1.442695
      %v528 = vpow.pop %v527
      %v529 = vmul.f32 %v516, 1.442695
      %v530 = vpow.pop %v529
      %v531 = vmul.f32 %v517, 1.442695
      %v532 = vpow.pop %v531
      %v533 = vmul.f32 %v518, 1.442695
      %v534 = vpow.pop %v533
      %vm535 = vcmask 7168
      %536 = vst.msk [vmem:[#allocation3] sm:$0xff] %vm535, %v503
      %537 = vst.msk [vmem:[#allocation3 + $0x8] sm:$0xff] %vm535, %v504
      %538 = vst.msk [vmem:[#allocation3 + $0x10] sm:$0xff] %vm535, %v505
      %539 = vst.msk [vmem:[#allocation3 + $0x18] sm:$0xff] %vm535, %v506
      %540 = vst.msk [vmem:[#allocation3 + $0x20] sm:$0xff] %vm535, %v507
      %541 = vst.msk [vmem:[#allocation3 + $0x28] sm:$0xff] %vm535, %v508
      %542 = vst.msk [vmem:[#allocation3 + $0x30] sm:$0xff] %vm535, %v509
      %543 = vst.msk [vmem:[#allocation3 + $0x38] sm:$0xff] %vm535, %v510
      %v544 = vld [vmem:[#allocation4] sm:$0xff]
      %v545 = vld [vmem:[#allocation4 + $0x8] sm:$0xff]
      %v546 = vld [vmem:[#allocation4 + $0x10] sm:$0xff]
      %v547 = vld [vmem:[#allocation4 + $0x18] sm:$0xff]
      %v548 = vld [vmem:[#allocation4 + $0x20] sm:$0xff]
      %v549 = vld [vmem:[#allocation4 + $0x28] sm:$0xff]
      %v550 = vld [vmem:[#allocation4 + $0x30] sm:$0xff]
      %v551 = vld [vmem:[#allocation4 + $0x38] sm:$0xff]
      %v552 = vmul.f32 %v520, %v544
      %v553 = vmul.f32 %v522, %v545
      %v554 = vmul.f32 %v524, %v546
      %v555 = vmul.f32 %v526, %v547
      %v556 = vmul.f32 %v528, %v548
      %v557 = vmul.f32 %v530, %v549
      %v558 = vmul.f32 %v532, %v550
      %v559 = vmul.f32 %v534, %v551
      %v560 = vld [vmem:[%s341] sm:$0xff]
      %v561 = vld [vmem:[%s341 + $0x8] sm:$0xff]
      %v562 = vld [vmem:[%s341 + $0x10] sm:$0xff]
      %v563 = vld [vmem:[%s341 + $0x18] sm:$0xff]
      %v564 = vld [vmem:[%s341 + $0x20] sm:$0xff]
      %v565 = vld [vmem:[%s341 + $0x28] sm:$0xff]
      %v566 = vld [vmem:[%s341 + $0x30] sm:$0xff]
      %v567 = vld [vmem:[%s341 + $0x38] sm:$0xff]
      %v568 = vld [vmem:[%s345] sm:$0x1]
      %569 = vset.pattern.permute.xlu0 0
      %570 = vperm.xlu0 %569, %v560
      %v571 = vpop.permute.xlu0 %570
      %572 = vset.pattern.permute.xlu0 0
      %573 = vperm.xlu0 %572, %v561
      %v574 = vpop.permute.xlu0 %573
      %575 = vset.pattern.permute.xlu0 0
      %576 = vperm.xlu0 %575, %v562
      %v577 = vpop.permute.xlu0 %576
      %578 = vset.pattern.permute.xlu0 0
      %579 = vperm.xlu0 %578, %v563
      %v580 = vpop.permute.xlu0 %579
      %581 = vset.pattern.permute.xlu0 0
      %582 = vperm.xlu0 %581, %v564
      %v583 = vpop.permute.xlu0 %582
      %584 = vset.pattern.permute.xlu0 0
      %585 = vperm.xlu0 %584, %v565
      %v586 = vpop.permute.xlu0 %585
      %587 = vset.pattern.permute.xlu0 0
      %588 = vperm.xlu0 %587, %v566
      %v589 = vpop.permute.xlu0 %588
      %590 = vset.pattern.permute.xlu0 0
      %591 = vperm.xlu0 %590, %v567
      %v592 = vpop.permute.xlu0 %591
      %v593 = vperm.slane %v568, 0
      %vm594 = vcmp.eq.s32.totalorder %v571, %v593
      %vm595 = vcmp.eq.s32.totalorder %v574, %v593
      %vm596 = vcmp.eq.s32.totalorder %v577, %v593
      %vm597 = vcmp.eq.s32.totalorder %v580, %v593
      %vm598 = vcmp.eq.s32.totalorder %v583, %v593
      %vm599 = vcmp.eq.s32.totalorder %v586, %v593
      %vm600 = vcmp.eq.s32.totalorder %v589, %v593
      %vm601 = vcmp.eq.s32.totalorder %v592, %v593
      %s602 = smul.u32 %s21, 64
      %s603 = smul.u32 %s22, 128
      %s604 = sadd.s32 %s602, 64
      %p605 = scmp.lt.s32.totalorder %s603, %s604
      %s606 = sadd.s32 %s603, 128
      %p607 = scmp.lt.s32.totalorder %s602, %s606
      %p608 = pnand %p605, %p607
      %p609 = pneg %p608
      %p610 = por %p609, %p361
      // Predicated region
      $region49: #{tpu_custom_call.1} parent=43 // pred_check
        %p611 = pneg %p610
      $region50: #{tpu_custom_call.1} parent=43 // pred_check_branch
        %613 = sbr.rel (%p611) target = $region52
      $region51: #{tpu_custom_call.1} parent=43 // pred_region
        %v614 = vlaneseq
        %v615 = vshrl.u32 %v614, 7
        %v616 = vadd.s32 %v615, 8
        %v617 = vadd.s32 %v615, 16
        %v618 = vadd.s32 %v615, 24
        %v619 = vadd.s32 %v615, 32
        %v620 = vadd.s32 %v615, 40
        %v621 = vadd.s32 %v615, 48
        %v622 = vadd.s32 %v615, 56
        %v623 = vstv %s602
        %v624 = vadd.s32 %v623, %v615
        %v625 = vadd.s32 %v623, %v616
        %v626 = vadd.s32 %v623, %v617
        %v627 = vadd.s32 %v623, %v618
        %v628 = vadd.s32 %v623, %v619
        %v629 = vadd.s32 %v623, %v620
        %v630 = vadd.s32 %v623, %v621
        %v631 = vadd.s32 %v623, %v622
        %v632 = vlaneseq
        %v633 = vand.u32 %v632, 127
        %v634 = vstv %s603
        %v635 = vadd.s32 %v634, %v633
        %vm636 = vcmp.ne.s32.totalorder %v624, %v635
        %vm637 = vcmp.ne.s32.totalorder %v625, %v635
        %vm638 = vcmp.ne.s32.totalorder %v626, %v635
        %vm639 = vcmp.ne.s32.totalorder %v627, %v635
        %vm640 = vcmp.ne.s32.totalorder %v628, %v635
        %vm641 = vcmp.ne.s32.totalorder %v629, %v635
        %vm642 = vcmp.ne.s32.totalorder %v630, %v635
        %vm643 = vcmp.ne.s32.totalorder %v631, %v635
        %v644 = vld [vmem:[%s348] sm:$0x1]
        %vm645 = vcmp.ne.s32.totalorder %v644, 0
        %v646 = vsel %vm645, 1, 0
        %v647 = vperm.slane %v646, 0
        %vm648 = vcmp.eq.s32.totalorder %v647, 1
        %vm649 = vmand %vm636, %vm648
        %vm650 = vmand %vm637, %vm648
        %vm651 = vmand %vm638, %vm648
        %vm652 = vmand %vm639, %vm648
        %vm653 = vmand %vm640, %vm648
        %vm654 = vmand %vm641, %vm648
        %vm655 = vmand %vm642, %vm648
        %vm656 = vmand %vm643, %vm648
        %658 = vset.pattern.permute.xlu0 0
        %659 = vperm.xlu0 %658, %v503
        %v660 = vpop.permute.xlu0 %659
        %663 = vset.pattern.permute.xlu0 0
        %664 = vperm.xlu0 %663, %v504
        %v665 = vpop.permute.xlu0 %664
        %668 = vset.pattern.permute.xlu0 0
        %669 = vperm.xlu0 %668, %v505
        %v670 = vpop.permute.xlu0 %669
        %673 = vset.pattern.permute.xlu0 0
        %674 = vperm.xlu0 %673, %v506
        %v675 = vpop.permute.xlu0 %674
        %678 = vset.pattern.permute.xlu0 0
        %679 = vperm.xlu0 %678, %v507
        %v680 = vpop.permute.xlu0 %679
        %683 = vset.pattern.permute.xlu0 0
        %684 = vperm.xlu0 %683, %v508
        %v685 = vpop.permute.xlu0 %684
        %688 = vset.pattern.permute.xlu0 0
        %689 = vperm.xlu0 %688, %v509
        %v690 = vpop.permute.xlu0 %689
        %693 = vset.pattern.permute.xlu0 0
        %694 = vperm.xlu0 %693, %v510
        %v695 = vpop.permute.xlu0 %694
        %v697 = vsub.f32 %v456, %v660
        %v698 = vsub.f32 %v459, %v665
        %v699 = vsub.f32 %v462, %v670
        %v700 = vsub.f32 %v465, %v675
        %v701 = vsub.f32 %v468, %v680
        %v702 = vsub.f32 %v471, %v685
        %v703 = vsub.f32 %v474, %v690
        %v704 = vsub.f32 %v477, %v695
        %v705 = vmul.f32 %v697, 1.442695
        %v706 = vpow.pop %v705
        %v707 = vmul.f32 %v698, 1.442695
        %v708 = vpow.pop %v707
        %v709 = vmul.f32 %v699, 1.442695
        %v710 = vpow.pop %v709
        %v711 = vmul.f32 %v700, 1.442695
        %v712 = vpow.pop %v711
        %v713 = vmul.f32 %v701, 1.442695
        %v714 = vpow.pop %v713
        %v715 = vmul.f32 %v702, 1.442695
        %v716 = vpow.pop %v715
        %v717 = vmul.f32 %v703, 1.442695
        %v718 = vpow.pop %v717
        %v719 = vmul.f32 %v704, 1.442695
        %v720 = vpow.pop %v719
        %v721 = vsel %vm649, %v706, 0.0
        %v722 = vsel %vm650, %v708, 0.0
        %v723 = vsel %vm651, %v710, 0.0
        %v724 = vsel %vm652, %v712, 0.0
        %v725 = vsel %vm653, %v714, 0.0
        %v726 = vsel %vm654, %v716, 0.0
        %v727 = vsel %vm655, %v718, 0.0
        %v728 = vsel %vm656, %v720, 0.0
        %729 = vadd.xlane.f32.xlu0 %v721
        %v730 = vpop.xlane.xlu0 %729
        %731 = vadd.xlane.f32.xlu0 %v722
        %v732 = vpop.xlane.xlu0 %731
        %733 = vadd.xlane.f32.xlu0 %v723
        %v734 = vpop.xlane.xlu0 %733
        %735 = vadd.xlane.f32.xlu0 %v724
        %v736 = vpop.xlane.xlu0 %735
        %737 = vadd.xlane.f32.xlu0 %v725
        %v738 = vpop.xlane.xlu0 %737
        %739 = vadd.xlane.f32.xlu0 %v726
        %v740 = vpop.xlane.xlu0 %739
        %741 = vadd.xlane.f32.xlu0 %v727
        %v742 = vpop.xlane.xlu0 %741
        %743 = vadd.xlane.f32.xlu0 %v728
        %v744 = vpop.xlane.xlu0 %743
        %v745 = vadd.f32 %v552, %v730
        %v746 = vadd.f32 %v553, %v732
        %v747 = vadd.f32 %v554, %v734
        %v748 = vadd.f32 %v555, %v736
        %v749 = vadd.f32 %v556, %v738
        %v750 = vadd.f32 %v557, %v740
        %v751 = vadd.f32 %v558, %v742
        %v752 = vadd.f32 %v559, %v744
        %753 = vst.msk [vmem:[#allocation4] sm:$0xff] %vm535, %v745
        %754 = vst.msk [vmem:[#allocation4 + $0x8] sm:$0xff] %vm535, %v746
        %755 = vst.msk [vmem:[#allocation4 + $0x10] sm:$0xff] %vm535, %v747
        %756 = vst.msk [vmem:[#allocation4 + $0x18] sm:$0xff] %vm535, %v748
        %757 = vst.msk [vmem:[#allocation4 + $0x20] sm:$0xff] %vm535, %v749
        %758 = vst.msk [vmem:[#allocation4 + $0x28] sm:$0xff] %vm535, %v750
        %759 = vst.msk [vmem:[#allocation4 + $0x30] sm:$0xff] %vm535, %v751
        %760 = vst.msk [vmem:[#allocation4 + $0x38] sm:$0xff] %vm535, %v752
        %vm761 = vmand %vm594, %vm649
        %vm762 = vmand %vm595, %vm650
        %vm763 = vmand %vm596, %vm651
        %vm764 = vmand %vm597, %vm652
        %vm765 = vmand %vm598, %vm653
        %vm766 = vmand %vm599, %vm654
        %vm767 = vmand %vm600, %vm655
        %vm768 = vmand %vm601, %vm656
        %v769 = vld [vmem:[#allocation5] sm:$0xff]
        %v770 = vld [vmem:[#allocation5 + $0x8] sm:$0xff]
        %v771 = vld [vmem:[#allocation5 + $0x10] sm:$0xff]
        %v772 = vld [vmem:[#allocation5 + $0x18] sm:$0xff]
        %v773 = vld [vmem:[#allocation5 + $0x20] sm:$0xff]
        %v774 = vld [vmem:[#allocation5 + $0x28] sm:$0xff]
        %v775 = vld [vmem:[#allocation5 + $0x30] sm:$0xff]
        %v776 = vld [vmem:[#allocation5 + $0x38] sm:$0xff]
        %v777 = vsel %vm761, %v456, 0.0
        %v778 = vsel %vm762, %v459, 0.0
        %v779 = vsel %vm763, %v462, 0.0
        %v780 = vsel %vm764, %v465, 0.0
        %v781 = vsel %vm765, %v468, 0.0
        %v782 = vsel %vm766, %v471, 0.0
        %v783 = vsel %vm767, %v474, 0.0
        %v784 = vsel %vm768, %v477, 0.0
        %785 = vadd.xlane.f32.xlu0 %v777
        %v786 = vpop.xlane.xlu0 %785
        %787 = vadd.xlane.f32.xlu0 %v778
        %v788 = vpop.xlane.xlu0 %787
        %789 = vadd.xlane.f32.xlu0 %v779
        %v790 = vpop.xlane.xlu0 %789
        %791 = vadd.xlane.f32.xlu0 %v780
        %v792 = vpop.xlane.xlu0 %791
        %793 = vadd.xlane.f32.xlu0 %v781
        %v794 = vpop.xlane.xlu0 %793
        %795 = vadd.xlane.f32.xlu0 %v782
        %v796 = vpop.xlane.xlu0 %795
        %797 = vadd.xlane.f32.xlu0 %v783
        %v798 = vpop.xlane.xlu0 %797
        %799 = vadd.xlane.f32.xlu0 %v784
        %v800 = vpop.xlane.xlu0 %799
        %v801 = vadd.f32 %v769, %v786
        %v802 = vadd.f32 %v770, %v788
        %v803 = vadd.f32 %v771, %v790
        %v804 = vadd.f32 %v772, %v792
        %v805 = vadd.f32 %v773, %v794
        %v806 = vadd.f32 %v774, %v796
        %v807 = vadd.f32 %v775, %v798
        %v808 = vadd.f32 %v776, %v800
        %809 = vst.msk [vmem:[#allocation5] sm:$0xff] %vm535, %v801
        %810 = vst.msk [vmem:[#allocation5 + $0x8] sm:$0xff] %vm535, %v802
        %811 = vst.msk [vmem:[#allocation5 + $0x10] sm:$0xff] %vm535, %v803
        %812 = vst.msk [vmem:[#allocation5 + $0x18] sm:$0xff] %vm535, %v804
        %813 = vst.msk [vmem:[#allocation5 + $0x20] sm:$0xff] %vm535, %v805
        %814 = vst.msk [vmem:[#allocation5 + $0x28] sm:$0xff] %vm535, %v806
        %815 = vst.msk [vmem:[#allocation5 + $0x30] sm:$0xff] %vm535, %v807
        %816 = vst.msk [vmem:[#allocation5 + $0x38] sm:$0xff] %vm535, %v808
      $region52: #{tpu_custom_call.1} parent=43 // pred_fallthru
        _
      %p817 = pneg %p610
      // Predicated region
      $region53: #{tpu_custom_call.1} parent=43 // pred_check
        _
      $region54: #{tpu_custom_call.1} parent=43 // pred_check_branch
        %819 = sbr.rel (%p610) target = $region56
      $region55: #{tpu_custom_call.1} parent=43 // pred_region
        %821 = vset.pattern.permute.xlu0 0
        %822 = vperm.xlu0 %821, %v503
        %v823 = vpop.permute.xlu0 %822
        %826 = vset.pattern.permute.xlu0 0
        %827 = vperm.xlu0 %826, %v504
        %v828 = vpop.permute.xlu0 %827
        %831 = vset.pattern.permute.xlu0 0
        %832 = vperm.xlu0 %831, %v505
        %v833 = vpop.permute.xlu0 %832
        %836 = vset.pattern.permute.xlu0 0
        %837 = vperm.xlu0 %836, %v506
        %v838 = vpop.permute.xlu0 %837
        %841 = vset.pattern.permute.xlu0 0
        %842 = vperm.xlu0 %841, %v507
        %v843 = vpop.permute.xlu0 %842
        %846 = vset.pattern.permute.xlu0 0
        %847 = vperm.xlu0 %846, %v508
        %v848 = vpop.permute.xlu0 %847
        %851 = vset.pattern.permute.xlu0 0
        %852 = vperm.xlu0 %851, %v509
        %v853 = vpop.permute.xlu0 %852
        %856 = vset.pattern.permute.xlu0 0
        %857 = vperm.xlu0 %856, %v510
        %v858 = vpop.permute.xlu0 %857
        %v860 = vsub.f32 %v456, %v823
        %v861 = vsub.f32 %v459, %v828
        %v862 = vsub.f32 %v462, %v833
        %v863 = vsub.f32 %v465, %v838
        %v864 = vsub.f32 %v468, %v843
        %v865 = vsub.f32 %v471, %v848
        %v866 = vsub.f32 %v474, %v853
        %v867 = vsub.f32 %v477, %v858
        %v868 = vmul.f32 %v860, 1.442695
        %v869 = vpow.pop %v868
        %v870 = vmul.f32 %v861, 1.442695
        %v871 = vpow.pop %v870
        %v872 = vmul.f32 %v862, 1.442695
        %v873 = vpow.pop %v872
        %v874 = vmul.f32 %v863, 1.442695
        %v875 = vpow.pop %v874
        %v876 = vmul.f32 %v864, 1.442695
        %v877 = vpow.pop %v876
        %v878 = vmul.f32 %v865, 1.442695
        %v879 = vpow.pop %v878
        %v880 = vmul.f32 %v866, 1.442695
        %v881 = vpow.pop %v880
        %v882 = vmul.f32 %v867, 1.442695
        %v883 = vpow.pop %v882
        %884 = vadd.xlane.f32.xlu0 %v869
        %v885 = vpop.xlane.xlu0 %884
        %886 = vadd.xlane.f32.xlu0 %v871
        %v887 = vpop.xlane.xlu0 %886
        %888 = vadd.xlane.f32.xlu0 %v873
        %v889 = vpop.xlane.xlu0 %888
        %890 = vadd.xlane.f32.xlu0 %v875
        %v891 = vpop.xlane.xlu0 %890
        %892 = vadd.xlane.f32.xlu0 %v877
        %v893 = vpop.xlane.xlu0 %892
        %894 = vadd.xlane.f32.xlu0 %v879
        %v895 = vpop.xlane.xlu0 %894
        %896 = vadd.xlane.f32.xlu0 %v881
        %v897 = vpop.xlane.xlu0 %896
        %898 = vadd.xlane.f32.xlu0 %v883
        %v899 = vpop.xlane.xlu0 %898
        %v900 = vadd.f32 %v552, %v885
        %v901 = vadd.f32 %v553, %v887
        %v902 = vadd.f32 %v554, %v889
        %v903 = vadd.f32 %v555, %v891
        %v904 = vadd.f32 %v556, %v893
        %v905 = vadd.f32 %v557, %v895
        %v906 = vadd.f32 %v558, %v897
        %v907 = vadd.f32 %v559, %v899
        %908 = vst.msk [vmem:[#allocation4] sm:$0xff] %vm535, %v900
        %909 = vst.msk [vmem:[#allocation4 + $0x8] sm:$0xff] %vm535, %v901
        %910 = vst.msk [vmem:[#allocation4 + $0x10] sm:$0xff] %vm535, %v902
        %911 = vst.msk [vmem:[#allocation4 + $0x18] sm:$0xff] %vm535, %v903
        %912 = vst.msk [vmem:[#allocation4 + $0x20] sm:$0xff] %vm535, %v904
        %913 = vst.msk [vmem:[#allocation4 + $0x28] sm:$0xff] %vm535, %v905
        %914 = vst.msk [vmem:[#allocation4 + $0x30] sm:$0xff] %vm535, %v906
        %915 = vst.msk [vmem:[#allocation4 + $0x38] sm:$0xff] %vm535, %v907
        %v916 = vld [vmem:[#allocation5] sm:$0xff]
        %v917 = vld [vmem:[#allocation5 + $0x8] sm:$0xff]
        %v918 = vld [vmem:[#allocation5 + $0x10] sm:$0xff]
        %v919 = vld [vmem:[#allocation5 + $0x18] sm:$0xff]
        %v920 = vld [vmem:[#allocation5 + $0x20] sm:$0xff]
        %v921 = vld [vmem:[#allocation5 + $0x28] sm:$0xff]
        %v922 = vld [vmem:[#allocation5 + $0x30] sm:$0xff]
        %v923 = vld [vmem:[#allocation5 + $0x38] sm:$0xff]
        %v924 = vsel %vm594, %v456, 0.0
        %v925 = vsel %vm595, %v459, 0.0
        %v926 = vsel %vm596, %v462, 0.0
        %v927 = vsel %vm597, %v465, 0.0
        %v928 = vsel %vm598, %v468, 0.0
        %v929 = vsel %vm599, %v471, 0.0
        %v930 = vsel %vm600, %v474, 0.0
        %v931 = vsel %vm601, %v477, 0.0
        %932 = vadd.xlane.f32.xlu0 %v924
        %v933 = vpop.xlane.xlu0 %932
        %934 = vadd.xlane.f32.xlu0 %v925
        %v935 = vpop.xlane.xlu0 %934
        %936 = vadd.xlane.f32.xlu0 %v926
        %v937 = vpop.xlane.xlu0 %936
        %938 = vadd.xlane.f32.xlu0 %v927
        %v939 = vpop.xlane.xlu0 %938
        %940 = vadd.xlane.f32.xlu0 %v928
        %v941 = vpop.xlane.xlu0 %940
        %942 = vadd.xlane.f32.xlu0 %v929
        %v943 = vpop.xlane.xlu0 %942
        %944 = vadd.xlane.f32.xlu0 %v930
        %v945 = vpop.xlane.xlu0 %944
        %946 = vadd.xlane.f32.xlu0 %v931
        %v947 = vpop.xlane.xlu0 %946
        %v948 = vadd.f32 %v916, %v933
        %v949 = vadd.f32 %v917, %v935
        %v950 = vadd.f32 %v918, %v937
        %v951 = vadd.f32 %v919, %v939
        %v952 = vadd.f32 %v920, %v941
        %v953 = vadd.f32 %v921, %v943
        %v954 = vadd.f32 %v922, %v945
        %v955 = vadd.f32 %v923, %v947
        %956 = vst.msk [vmem:[#allocation5] sm:$0xff] %vm535, %v948
        %957 = vst.msk [vmem:[#allocation5 + $0x8] sm:$0xff] %vm535, %v949
        %958 = vst.msk [vmem:[#allocation5 + $0x10] sm:$0xff] %vm535, %v950
        %959 = vst.msk [vmem:[#allocation5 + $0x18] sm:$0xff] %vm535, %v951
        %960 = vst.msk [vmem:[#allocation5 + $0x20] sm:$0xff] %vm535, %v952
        %961 = vst.msk [vmem:[#allocation5 + $0x28] sm:$0xff] %vm535, %v953
        %962 = vst.msk [vmem:[#allocation5 + $0x30] sm:$0xff] %vm535, %v954
        %963 = vst.msk [vmem:[#allocation5 + $0x38] sm:$0xff] %vm535, %v955
      $region56: #{tpu_custom_call.1} parent=43 // pred_fallthru
        _
      // Predicated region
      $region57: #{tpu_custom_call.1} parent=43 // pred_check
        %p964 = pneg %p361
      $region58: #{tpu_custom_call.1} parent=43 // pred_check_branch
        %966 = sbr.rel (%p964) target = $region60
      $region59: #{tpu_custom_call.1} parent=43 // pred_region
        %v967 = vld [vmem:[%s353] sm:$0xff]
        %v968 = vld [vmem:[%s353 + $0x8] sm:$0xff]
        %v969 = vld [vmem:[%s353 + $0x10] sm:$0xff]
        %v970 = vld [vmem:[%s353 + $0x18] sm:$0xff]
        %v971 = vld [vmem:[%s353 + $0x20] sm:$0xff]
        %v972 = vld [vmem:[%s353 + $0x28] sm:$0xff]
        %v973 = vld [vmem:[%s353 + $0x30] sm:$0xff]
        %v974 = vld [vmem:[%s353 + $0x38] sm:$0xff]
        %v975 = vmax.f32 %v967, 1.0
        %v976 = vmax.f32 %v968, 1.0
        %v977 = vmax.f32 %v969, 1.0
        %v978 = vmax.f32 %v970, 1.0
        %v979 = vmax.f32 %v971, 1.0
        %v980 = vmax.f32 %v972, 1.0
        %v981 = vmax.f32 %v973, 1.0
        %v982 = vmax.f32 %v974, 1.0
        %v983 = vld [vmem:[#allocation3] sm:$0xff]
        %v984 = vld [vmem:[#allocation3 + $0x8] sm:$0xff]
        %v985 = vld [vmem:[#allocation3 + $0x10] sm:$0xff]
        %v986 = vld [vmem:[#allocation3 + $0x18] sm:$0xff]
        %v987 = vld [vmem:[#allocation3 + $0x20] sm:$0xff]
        %v988 = vld [vmem:[#allocation3 + $0x28] sm:$0xff]
        %v989 = vld [vmem:[#allocation3 + $0x30] sm:$0xff]
        %v990 = vld [vmem:[#allocation3 + $0x38] sm:$0xff]
        %v991 = vld [vmem:[#allocation4] sm:$0xff]
        %v992 = vld [vmem:[#allocation4 + $0x8] sm:$0xff]
        %v993 = vld [vmem:[#allocation4 + $0x10] sm:$0xff]
        %v994 = vld [vmem:[#allocation4 + $0x18] sm:$0xff]
        %v995 = vld [vmem:[#allocation4 + $0x20] sm:$0xff]
        %v996 = vld [vmem:[#allocation4 + $0x28] sm:$0xff]
        %v997 = vld [vmem:[#allocation4 + $0x30] sm:$0xff]
        %v998 = vld [vmem:[#allocation4 + $0x38] sm:$0xff]
        %v999 = vlog2.pop %v991
        %v1000 = vmul.f32 %v999, 0.6931472
        %v1001 = vlog2.pop %v992
        %v1002 = vmul.f32 %v1001, 0.6931472
        %v1003 = vlog2.pop %v993
        %v1004 = vmul.f32 %v1003, 0.6931472
        %v1005 = vlog2.pop %v994
        %v1006 = vmul.f32 %v1005, 0.6931472
        %v1007 = vlog2.pop %v995
        %v1008 = vmul.f32 %v1007, 0.6931472
        %v1009 = vlog2.pop %v996
        %v1010 = vmul.f32 %v1009, 0.6931472
        %v1011 = vlog2.pop %v997
        %v1012 = vmul.f32 %v1011, 0.6931472
        %v1013 = vlog2.pop %v998
        %v1014 = vmul.f32 %v1013, 0.6931472
        %v1015 = vadd.f32 %v983, %v1000
        %v1016 = vadd.f32 %v984, %v1002
        %v1017 = vadd.f32 %v985, %v1004
        %v1018 = vadd.f32 %v986, %v1006
        %v1019 = vadd.f32 %v987, %v1008
        %v1020 = vadd.f32 %v988, %v1010
        %v1021 = vadd.f32 %v989, %v1012
        %v1022 = vadd.f32 %v990, %v1014
        %v1023 = vld [vmem:[#allocation5] sm:$0xff]
        %v1024 = vld [vmem:[#allocation5 + $0x8] sm:$0xff]
        %v1025 = vld [vmem:[#allocation5 + $0x10] sm:$0xff]
        %v1026 = vld [vmem:[#allocation5 + $0x18] sm:$0xff]
        %v1027 = vld [vmem:[#allocation5 + $0x20] sm:$0xff]
        %v1028 = vld [vmem:[#allocation5 + $0x28] sm:$0xff]
        %v1029 = vld [vmem:[#allocation5 + $0x30] sm:$0xff]
        %v1030 = vld [vmem:[#allocation5 + $0x38] sm:$0xff]
        %v1031 = vrcp.pop %v975
        %v1032 = vmul.f32 %v975, %v1031
        %v1033 = vsub.f32 1.0, %v1032
        %v1034 = vmul.f32 %v1031, %v1033
        %v1035 = vadd.f32 %v1031, %v1034
        %vm1036 = vweird.f32 %v975
        %vm1037 = vweird.f32 %v1031
        %vm1038 = vmor %vm1036, %vm1037
        %v1039 = vsel %vm1038, %v1031, %v1035
        %v1040 = vand.u32 2147483647, %v975
        %vm1041 = vcmp.eq.f32.partialorder %v1040, 8.507059e+37
        %v1042 = vand.u32 %v975, 2147483648
        %v1043 = vor.u32 1.1754944e-38, %v1042
        %v1044 = vsel %vm1041, %v1043, %v1039
        %v1045 = vmul.f32 %v1023, %v1044
        %v1046 = vrcp.pop %v976
        %v1047 = vmul.f32 %v976, %v1046
        %v1048 = vsub.f32 1.0, %v1047
        %v1049 = vmul.f32 %v1046, %v1048
        %v1050 = vadd.f32 %v1046, %v1049
        %vm1051 = vweird.f32 %v976
        %vm1052 = vweird.f32 %v1046
        %vm1053 = vmor %vm1051, %vm1052
        %v1054 = vsel %vm1053, %v1046, %v1050
        %v1055 = vand.u32 2147483647, %v976
        %vm1056 = vcmp.eq.f32.partialorder %v1055, 8.507059e+37
        %v1057 = vand.u32 %v976, 2147483648
        %v1058 = vor.u32 1.1754944e-38, %v1057
        %v1059 = vsel %vm1056, %v1058, %v1054
        %v1060 = vmul.f32 %v1024, %v1059
        %v1061 = vrcp.pop %v977
        %v1062 = vmul.f32 %v977, %v1061
        %v1063 = vsub.f32 1.0, %v1062
        %v1064 = vmul.f32 %v1061, %v1063
        %v1065 = vadd.f32 %v1061, %v1064
        %vm1066 = vweird.f32 %v977
        %vm1067 = vweird.f32 %v1061
        %vm1068 = vmor %vm1066, %vm1067
        %v1069 = vsel %vm1068, %v1061, %v1065
        %v1070 = vand.u32 2147483647, %v977
        %vm1071 = vcmp.eq.f32.partialorder %v1070, 8.507059e+37
        %v1072 = vand.u32 %v977, 2147483648
        %v1073 = vor.u32 1.1754944e-38, %v1072
        %v1074 = vsel %vm1071, %v1073, %v1069
        %v1075 = vmul.f32 %v1025, %v1074
        %v1076 = vrcp.pop %v978
        %v1077 = vmul.f32 %v978, %v1076
        %v1078 = vsub.f32 1.0, %v1077
        %v1079 = vmul.f32 %v1076, %v1078
        %v1080 = vadd.f32 %v1076, %v1079
        %vm1081 = vweird.f32 %v978
        %vm1082 = vweird.f32 %v1076
        %vm1083 = vmor %vm1081, %vm1082
        %v1084 = vsel %vm1083, %v1076, %v1080
        %v1085 = vand.u32 2147483647, %v978
        %vm1086 = vcmp.eq.f32.partialorder %v1085, 8.507059e+37
        %v1087 = vand.u32 %v978, 2147483648
        %v1088 = vor.u32 1.1754944e-38, %v1087
        %v1089 = vsel %vm1086, %v1088, %v1084
        %v1090 = vmul.f32 %v1026, %v1089
        %v1091 = vrcp.pop %v979
        %v1092 = vmul.f32 %v979, %v1091
        %v1093 = vsub.f32 1.0, %v1092
        %v1094 = vmul.f32 %v1091, %v1093
        %v1095 = vadd.f32 %v1091, %v1094
        %vm1096 = vweird.f32 %v979
        %vm1097 = vweird.f32 %v1091
        %vm1098 = vmor %vm1096, %vm1097
        %v1099 = vsel %vm1098, %v1091, %v1095
        %v1100 = vand.u32 2147483647, %v979
        %vm1101 = vcmp.eq.f32.partialorder %v1100, 8.507059e+37
        %v1102 = vand.u32 %v979, 2147483648
        %v1103 = vor.u32 1.1754944e-38, %v1102
        %v1104 = vsel %vm1101, %v1103, %v1099
        %v1105 = vmul.f32 %v1027, %v1104
        %v1106 = vrcp.pop %v980
        %v1107 = vmul.f32 %v980, %v1106
        %v1108 = vsub.f32 1.0, %v1107
        %v1109 = vmul.f32 %v1106, %v1108
        %v1110 = vadd.f32 %v1106, %v1109
        %vm1111 = vweird.f32 %v980
        %vm1112 = vweird.f32 %v1106
        %vm1113 = vmor %vm1111, %vm1112
        %v1114 = vsel %vm1113, %v1106, %v1110
        %v1115 = vand.u32 2147483647, %v980
        %vm1116 = vcmp.eq.f32.partialorder %v1115, 8.507059e+37
        %v1117 = vand.u32 %v980, 2147483648
        %v1118 = vor.u32 1.1754944e-38, %v1117
        %v1119 = vsel %vm1116, %v1118, %v1114
        %v1120 = vmul.f32 %v1028, %v1119
        %v1121 = vrcp.pop %v981
        %v1122 = vmul.f32 %v981, %v1121
        %v1123 = vsub.f32 1.0, %v1122
        %v1124 = vmul.f32 %v1121, %v1123
        %v1125 = vadd.f32 %v1121, %v1124
        %vm1126 = vweird.f32 %v981
        %vm1127 = vweird.f32 %v1121
        %vm1128 = vmor %vm1126, %vm1127
        %v1129 = vsel %vm1128, %v1121, %v1125
        %v1130 = vand.u32 2147483647, %v981
        %vm1131 = vcmp.eq.f32.partialorder %v1130, 8.507059e+37
        %v1132 = vand.u32 %v981, 2147483648
        %v1133 = vor.u32 1.1754944e-38, %v1132
        %v1134 = vsel %vm1131, %v1133, %v1129
        %v1135 = vmul.f32 %v1029, %v1134
        %v1136 = vrcp.pop %v982
        %v1137 = vmul.f32 %v982, %v1136
        %v1138 = vsub.f32 1.0, %v1137
        %v1139 = vmul.f32 %v1136, %v1138
        %v1140 = vadd.f32 %v1136, %v1139
        %vm1141 = vweird.f32 %v982
        %vm1142 = vweird.f32 %v1136
        %vm1143 = vmor %vm1141, %vm1142
        %v1144 = vsel %vm1143, %v1136, %v1140
        %v1145 = vand.u32 2147483647, %v982
        %vm1146 = vcmp.eq.f32.partialorder %v1145, 8.507059e+37
        %v1147 = vand.u32 %v982, 2147483648
        %v1148 = vor.u32 1.1754944e-38, %v1147
        %v1149 = vsel %vm1146, %v1148, %v1144
        %v1150 = vmul.f32 %v1030, %v1149
        %v1151 = vsub.f32 %v1015, %v1045
        %v1152 = vsub.f32 %v1016, %v1060
        %v1153 = vsub.f32 %v1017, %v1075
        %v1154 = vsub.f32 %v1018, %v1090
        %v1155 = vsub.f32 %v1019, %v1105
        %v1156 = vsub.f32 %v1020, %v1120
        %v1157 = vsub.f32 %v1021, %v1135
        %v1158 = vsub.f32 %v1022, %v1150
        %1159 = vst.msk [vmem:[%s359] sm:$0xff] %vm535, %v1151
        %1160 = vst.msk [vmem:[%s359 + $0x8] sm:$0xff] %vm535, %v1152
        %1161 = vst.msk [vmem:[%s359 + $0x10] sm:$0xff] %vm535, %v1153
        %1162 = vst.msk [vmem:[%s359 + $0x18] sm:$0xff] %vm535, %v1154
        %1163 = vst.msk [vmem:[%s359 + $0x20] sm:$0xff] %vm535, %v1155
        %1164 = vst.msk [vmem:[%s359 + $0x28] sm:$0xff] %vm535, %v1156
        %1165 = vst.msk [vmem:[%s359 + $0x30] sm:$0xff] %vm535, %v1157
        %1166 = vst.msk [vmem:[%s359 + $0x38] sm:$0xff] %vm535, %v1158
      $region60: #{tpu_custom_call.1} parent=43 // pred_fallthru
        _
      %s1167 = smul.u32 8, %s21
      %p1168 = scmp.lt.s32.totalorder %s1167, 15
      %s1169 = scalar_select %p1168, %s1167, 15
      %s1170 = smul.addr %s1169, 8
      %s1171 = scalar_lea.vmem %s6, %s1170
      // Predicated region
      $region61: #{tpu_custom_call.1} parent=43 // pred_check
        %p1172 = pneg %p203
      $region62: #{tpu_custom_call.1} parent=43 // pred_check_branch
        %1174 = sbr.rel (%p1172) target = $region64
      $region63: #{tpu_custom_call.1} parent=43 // pred_region
        %s1175 = smul.u32 8, %s21
      $region64: #{tpu_custom_call.1} parent=43 // pred_fallthru
        _
    $region44: #{tpu_custom_call.1} parent=5 // pred_fallthru
      _
    %p1176 = scmp.le.s32.totalorder 2, %s12
    // Predicated region
    $region65: #{tpu_custom_call.1} parent=5 // pred_check
      %p1177 = pneg %p1176
    $region66: #{tpu_custom_call.1} parent=5 // pred_check_branch
      %1179 = sbr.rel (%p1177) target = $region68
    $region67: #{tpu_custom_call.1} parent=5 // pred_region
      %s1180 = ssub.s32 %s12, 2
      // Predicated region
      $region69: #{tpu_custom_call.1} parent=67 // pred_check
        %p1181 = pneg %p209
      $region70: #{tpu_custom_call.1} parent=67 // pred_check_branch
        %1183 = sbr.rel (%p1181) target = $region72
      $region71: #{tpu_custom_call.1} parent=67 // pred_region
        %s1184 = smul.u32 8, %s23
        %p1185 = scmp.lt.s32.totalorder %s1184, 15
        %s1186 = scalar_select %p1185, %s1184, 15
        %s1187 = smul.addr %s1186, 8
        %s1188 = scalar_lea.vmem %s6, %s1187
      $region72: #{tpu_custom_call.1} parent=67 // pred_fallthru
        _
    $region68: #{tpu_custom_call.1} parent=5 // pred_fallthru
      _
  $region6: #{tpu_custom_call.1} parent=0 // loop_footer
    %s16 = sadd.s32 1, %s12
  $region7: #{tpu_custom_call.1} parent=0 // loop_footer_branch
    %11 = sbr.rel target = $region3
  $region8: #{tpu_custom_call.1} parent=0 // loop_exit
    _

</llo_original>
